<compile_context>
chip_gen: v6e
topology: v6e:2x2x1
jax: 0.10.0
libtpu: 0.0.40
codegen_flags: <defaults>
</compile_context>

<pallas_src>
import functools

import jax
import jax.numpy as jnp
from jax import lax
from jax.experimental import pallas as pl
from jax.experimental.pallas import tpu as pltpu


def _round_up(x: int, m: int) -> int:
    return (x + m - 1) // m * m


def _pick_num_strips(H: int, Wp: int, max_strip_rows: int) -> int:
    """Smallest divisor d of H with (H // d) * Wp <= max_strip_rows (else H)."""
    if H * Wp <= max_strip_rows:
        return 1
    for d in range(1, H + 1):
        if H % d == 0 and (H // d) * Wp <= max_strip_rows:
            return d
    return H


def _default_compute_dtype():
    """bf16 MXU path on v6e/v7x and newer, f32 on v5e and older (no bf16 VALU)."""
    kind = jax.devices()[0].device_kind.lower()
    if "tpu" not in kind:
        return jnp.float32
    for old in ("v2", "v3", "v4", "v5"):
        if old in kind:
            return jnp.float32
    return jnp.bfloat16


def _fire_kernel(x_ref, wsq_ref, bsq_ref, *rest,
                 W, Wp, n_strips, sub, unfold, compute_dtype):
    # x_ref   : (1, HWp, Cin)        VMEM input image block (NHWC, W padded, flat)
    # wsq_ref : (Cin, Cs)            VMEM squeeze 1x1 weight (compute dtype)
    # bsq_ref : (1, Cs)              VMEM squeeze bias (f32)
    # [we1_ref: (Cs, E1)]            VMEM expand1x1 weight (only when unfold)
    # wexp_ref: (3, 3*Cs, E)         VMEM kx-stacked 3x3 (+folded 1x1) weight
    # bexp_ref: (1, Cout)            VMEM expand bias  [be1 | b3] (f32)
    # out_ref : (1, HWp, Cout)       VMEM output block (f32)
    # spad_ref: ((H+2)*Wp, 3*Cs)     VMEM H-padded, kx-stacked squeeze scratch
    if unfold:
        we1_ref, wexp_ref, bexp_ref, out_ref, spad_ref = rest
    else:
        wexp_ref, bexp_ref, out_ref, spad_ref = rest
        we1_ref = None
    _, HWp, _ = x_ref.shape
    Cs = wsq_ref.shape[1]
    H = HWp // Wp

    # ---- squeeze: 1x1 conv + ReLU (single MXU matmul, f32 accumulation) ----
    s = jnp.dot(x_ref[0], wsq_ref[...], preferred_element_type=jnp.float32)
    s = jnp.maximum(s + bsq_ref[...], 0.0)                    # (HWp, Cs) f32

    # Column masks from a cheap (HWp, 1) iota; all VPU work kept in f32.
    wcol = lax.broadcasted_iota(jnp.int32, (HWp, 1), 0) % Wp
    if Wp > W:
        # Zero the padded columns (bias+ReLU residue); they then serve as the
        # conv zero-padding rolled into the kx = +/-1 edge positions below.
        s = jnp.where(wcol < W, s, 0.0)

    # kx shifts via sublane roll (XLU slot, otherwise idle).
    s_m1 = pltpu.roll(s, shift=1, axis=0)          # -> s[h, w-1]   (kx = 0)
    s_p1 = pltpu.roll(s, shift=HWp - 1, axis=0)    # -> s[h, w+1]   (kx = 2)
    if Wp == W:
        # No pad columns -> mask the wrapped edge columns explicitly.
        s_m1 = jnp.where(wcol == 0, 0.0, s_m1)
        s_p1 = jnp.where(wcol == W - 1, 0.0, s_p1)

    # kx-stacked operand [kx=1 | kx=0 | kx=2]; cast once to the MXU dtype.
    cat = jnp.concatenate([s, s_m1, s_p1], axis=-1).astype(compute_dtype)

    # ---- H-padded scratch: scratch row r+Wp <-> squeeze flat row r ----
    # Only the two border row-bands are zeroed (top/bottom conv padding rows);
    # done every grid step so the batch axis stays safely "parallel".
    zband = jnp.zeros((Wp, 3 * Cs), compute_dtype)
    spad_ref[0:Wp, :] = zband
    spad_ref[(H + 1) * Wp:(H + 2) * Wp, :] = zband
    spad_ref[Wp:(H + 1) * Wp, :] = cat

    w_ky0 = wexp_ref[0]
    w_ky1 = wexp_ref[1]
    w_ky2 = wexp_ref[2]
    bexp = bexp_ref[...]                                       # (1, Cout) f32
    we1_v = we1_ref[...] if unfold else None
    E1 = we1_v.shape[1] if unfold else 0

    Lf = HWp // n_strips          # flat rows per strip (multiple of Wp -> aligned)

    def strip(r0):
        # ky = 0 / 1 / 2 operands: sublane-aligned slices of the scratch.
        op_t = spad_ref[pl.ds(r0, Lf), :]
        op_c = spad_ref[pl.ds(r0 + Wp, Lf), :]
        op_b = spad_ref[pl.ds(r0 + 2 * Wp, Lf), :]
        acc3 = jnp.dot(op_c, w_ky1, preferred_element_type=jnp.float32)
        acc3 = acc3 + jnp.dot(op_t, w_ky0, preferred_element_type=jnp.float32)
        acc3 = acc3 + jnp.dot(op_b, w_ky2, preferred_element_type=jnp.float32)
        if unfold:
            # Separate K = Cs matmul for the 1x1 path (E1 is lane-aligned, so
            # the concat below sits on a lane-tile boundary -> dense store).
            acc1 = jnp.dot(op_c[:, 0:Cs], we1_v,
                           preferred_element_type=jnp.float32)
            y1 = jnp.maximum(acc1 + bexp[:, 0:E1], 0.0)
            y3 = jnp.maximum(acc3 + bexp[:, E1:], 0.0)
            y = jnp.concatenate([y1, y3], axis=-1)
        else:
            y = jnp.maximum(acc3 + bexp, 0.0)
        out_ref[0, pl.ds(r0, Lf), :] = y.astype(out_ref.dtype)

    if n_strips == 1:
        strip(0)
    else:
        def body(i, carry):
            strip(pl.multiple_of(i * Lf, sub))
            return carry
        lax.fori_loop(0, n_strips, body, 0)


@functools.partial(jax.jit, static_argnames=("compute_dtype", "max_strip_rows"))
def _fire_forward(x_nchw, wsq, bsq, we1, be1, w3, b3, *,
                  compute_dtype, max_strip_rows):
    N, Cin, H, W = x_nchw.shape
    Cs = wsq.shape[1]
    E1 = we1.shape[1]
    E3 = w3.shape[3]
    Cout = E1 + E3

    cdt = jnp.dtype(compute_dtype)
    sub = 8 * (4 // cdt.itemsize)            # sublane packing: 8 (f32) / 16 (bf16)
    Wp = _round_up(W, sub)
    HWp = H * Wp
    unfold = (E1 % 128 == 0)                 # lane-aligned expand1x1 -> un-fold it
    n_strips = _pick_num_strips(H, Wp, max_strip_rows)

    bsq = bsq.reshape(1, Cs).astype(jnp.float32)
    be1 = be1.reshape(1, E1).astype(jnp.float32)
    b3 = b3.reshape(1, E3).astype(jnp.float32)

    # NCHW -> NHWC, pad W to the sublane multiple, flatten spatial dims
    # (wrapper-side reshapes are free metadata / XLA glue, not kernel work).
    x = jnp.transpose(x_nchw, (0, 2, 3, 1))
    x = jnp.pad(x, ((0, 0), (0, 0), (0, Wp - W), (0, 0)))
    x = x.reshape(N, HWp, Cin).astype(cdt)

    # kx-stacked 3x3 weight per ky slab, column order [kx=1 | kx=0 | kx=2]
    # to match cat = [s | s[w-1] | s[w+1]].
    w3s = jnp.stack(
        [jnp.concatenate([w3[ky, 1], w3[ky, 0], w3[ky, 2]], axis=0)
         for ky in range(3)], axis=0)                          # (3, 3*Cs, E3)
    if unfold:
        w_exp = w3s.astype(cdt)
        we1_c = we1.astype(cdt)
    else:
        # Fold the 1x1 into the centre tap (rows 0:Cs of the ky=1 slab).
        we1_slab = jnp.zeros((3, 3 * Cs, E1), w3.dtype).at[1, 0:Cs, :].set(we1)
        w_exp = jnp.concatenate([we1_slab, w3s], axis=-1).astype(cdt)
    wsq_c = wsq.astype(cdt)
    b_exp = jnp.concatenate([be1, b3], axis=-1)                # (1, Cout) f32

    kernel = functools.partial(_fire_kernel, W=W, Wp=Wp, n_strips=n_strips,
                               sub=sub, unfold=unfold, compute_dtype=cdt)

    inputs = [x, wsq_c, bsq]
    in_specs = [
        pl.BlockSpec((1, HWp, Cin), lambda n: (n, 0, 0)),
        pl.BlockSpec((Cin, Cs), lambda n: (0, 0)),
        pl.BlockSpec((1, Cs), lambda n: (0, 0)),
    ]
    if unfold:
        inputs.append(we1_c)
        in_specs.append(pl.BlockSpec((Cs, E1), lambda n: (0, 0)))
    inputs += [w_exp, b_exp]
    in_specs += [
        pl.BlockSpec(w_exp.shape, lambda n: (0, 0, 0)),
        pl.BlockSpec((1, Cout), lambda n: (0, 0)),
    ]

    e1_k = Cs if unfold else 9 * Cs
    flops = 2 * N * HWp * (Cin * Cs + 9 * Cs * E3 + e1_k * E1)
    bytes_accessed = (N * HWp * Cin * cdt.itemsize + N * HWp * Cout * 4
                      + (wsq_c.size + w_exp.size
                         + (we1.size if unfold else 0)) * cdt.itemsize
                      + (bsq.size + b_exp.size) * 4)

    out_flat = pl.pallas_call(
        kernel,
        out_shape=jax.ShapeDtypeStruct((N, HWp, Cout), jnp.float32),
        grid_spec=pltpu.PrefetchScalarGridSpec(
            num_scalar_prefetch=0,
            grid=(N,),
            in_specs=in_specs,
            out_specs=pl.BlockSpec((1, HWp, Cout), lambda n: (n, 0, 0)),
            scratch_shapes=[pltpu.VMEM(((H + 2) * Wp, 3 * Cs), cdt)],
        ),
        compiler_params=pltpu.CompilerParams(
            dimension_semantics=("parallel",)),
        cost_estimate=pl.CostEstimate(flops=flops, transcendentals=0,
                                      bytes_accessed=bytes_accessed),
    )(*inputs)

    out = out_flat.reshape(N, H, Wp, Cout)[:, :, :W, :]        # drop W padding
    return jnp.transpose(out, (0, 3, 1, 2))                    # NHWC -> NCHW


def fire_forward(x_nchw, wsq, bsq, we1, be1, w3, b3,
                 compute_dtype=None, max_strip_rows=1024):
    """Fire forward.  x_nchw: (N, Cin, H, W) f32.  Returns (N, E1+E3, H, W) f32.

    Weight layouts (torch -> here): squeeze (Cs,Cin,1,1)->(Cin,Cs), bias (1,Cs);
    expand1x1 (E1,Cs,1,1)->(Cs,E1); expand3x3 (E3,Cs,3,3)->HWIO (3,3,Cs,E3).
    """
    if compute_dtype is None:
        compute_dtype = _default_compute_dtype()
    return _fire_forward(x_nchw, wsq, bsq, we1, be1, w3, b3,
                         compute_dtype=jnp.dtype(compute_dtype),
                         max_strip_rows=int(max_strip_rows))


def fire_reference(x_nchw, wsq, bsq, we1, be1, w3, b3):
    """Pure-JAX reference (matches torch Conv2d semantics) for validation."""
    Cin, Cs = wsq.shape
    E1 = we1.shape[1]
    E3 = w3.shape[3]
    x = jnp.transpose(x_nchw, (0, 2, 3, 1))
    dn = ('NHWC', 'HWIO', 'NHWC')
    s = jax.nn.relu(
        lax.conv_general_dilated(x, wsq.reshape(1, 1, Cin, Cs), (1, 1),
                                 'VALID', dimension_numbers=dn)
        + bsq.reshape(1, 1, 1, Cs))
    e1 = jax.nn.relu(
        lax.conv_general_dilated(s, we1.reshape(1, 1, Cs, E1), (1, 1),
                                 'VALID', dimension_numbers=dn)
        + be1.reshape(1, 1, 1, E1))
    e3 = jax.nn.relu(
        lax.conv_general_dilated(s, w3, (1, 1), 'SAME', dimension_numbers=dn)
        + b3.reshape(1, 1, 1, E3))
    out = jnp.concatenate([e1, e3], axis=-1)
    return jnp.transpose(out, (0, 3, 1, 2))


if __name__ == "__main__":
    key = jax.random.PRNGKey(0)

    def make_params(k, Cin, Cs, E1, E3):
        k1, k2, k3, k4, k5, k6 = jax.random.split(k, 6)
        return (0.3 * jax.random.normal(k1, (Cin, Cs), jnp.float32),
                0.1 * jax.random.normal(k2, (1, Cs), jnp.float32),
                0.3 * jax.random.normal(k3, (Cs, E1), jnp.float32),
                0.1 * jax.random.normal(k4, (1, E1), jnp.float32),
                0.3 * jax.random.normal(k5, (3, 3, Cs, E3), jnp.float32),
                0.1 * jax.random.normal(k6, (1, E3), jnp.float32))

    def check(name, x, params, tol, **kw):
        out = jax.block_until_ready(fire_forward(x, *params, **kw))
        ref = fire_reference(x, *params)
        assert out.shape == ref.shape, (name, out.shape, ref.shape)
        err = float(jnp.max(jnp.abs(out - ref)))
        assert err <= tol, (name, err)

    # 1) Toy Fire (folded 1x1, W multiple of 8 -> edge-mask path), exact f32.
    kx1, kp1, kx2, kp2 = jax.random.split(key, 4)
    x1 = jax.random.normal(kx1, (2, 4, 16, 16), jnp.float32)
    p1 = make_params(kp1, 4, 8, 8, 8)
    check("toy_f32", x1, p1, 1e-4, compute_dtype=jnp.float32)

    # 2) Lane-aligned expand1x1 (un-folded path), W=13 padded to 16, forced
    #    multi-strip expand loop (max_strip_rows=64), exact f32.
    x2 = jax.random.normal(kx2, (1, 16, 13, 13), jnp.float32)
    p2 = make_params(kp2, 16, 16, 128, 64)
    check("unfold_pad_strips_f32", x2, p2, 1e-3,
          compute_dtype=jnp.float32, max_strip_rows=64)

    # 3) Generation-default compute dtype (bf16 on v6e/v7x, f32 on <= v5e).
    auto_dt = jnp.dtype(_default_compute_dtype())
    tol = 1e-4 if auto_dt == jnp.dtype(jnp.float32) else 1e-1
    check("auto_dtype", x1, p1, tol, compute_dtype=None)

    print("KERNEL_OK")
</pallas_src>

<mosaic_0001>
module attributes {stable_mosaic.version = 11 : i64} {
  func.func @_fire_kernel(%arg0: i32, %arg1: memref<1x256x4xf32, #tpu.memory_space<vmem>>, %arg2: memref<4x8xf32, #tpu.memory_space<vmem>>, %arg3: memref<1x8xf32, #tpu.memory_space<vmem>>, %arg4: memref<3x24x16xf32, #tpu.memory_space<vmem>>, %arg5: memref<1x16xf32, #tpu.memory_space<vmem>>, %arg6: memref<1x256x16xf32, #tpu.memory_space<vmem>>, %arg7: memref<288x24xf32, #tpu.memory_space<vmem>>) attributes {dimension_semantics = [#tpu.dimension_semantics<parallel>], iteration_bounds = array<i64: 2>, scalar_prefetch = 0 : i64, scratch_operands = 1 : i64, tpu.core_type = #tpu.core_type<tc>, window_params = [{transform_indices = @transform_0, window_bounds = array<i64: 1, 256, 4>}, {pipeline_mode = #tpu.pipeline_mode<synchronous>, transform_indices = @transform_1, window_bounds = array<i64: 4, 8>}, {pipeline_mode = #tpu.pipeline_mode<synchronous>, transform_indices = @transform_2, window_bounds = array<i64: 1, 8>}, {pipeline_mode = #tpu.pipeline_mode<synchronous>, transform_indices = @transform_3, window_bounds = array<i64: 3, 24, 16>}, {pipeline_mode = #tpu.pipeline_mode<synchronous>, transform_indices = @transform_4, window_bounds = array<i64: 1, 16>}, {transform_indices = @transform_5, window_bounds = array<i64: 1, 256, 16>}]} {
    %c0 = arith.constant 0 : index
    %c0_0 = arith.constant 0 : index
    %c0_1 = arith.constant 0 : index
    %0 = vector.load %arg1[%c0, %c0_0, %c0_1] : memref<1x256x4xf32, #tpu.memory_space<vmem>>, vector<1x256x4xf32>
    %1 = vector.shape_cast %0 : vector<1x256x4xf32> to vector<256x4xf32>
    %c0_2 = arith.constant 0 : index
    %c0_3 = arith.constant 0 : index
    %2 = vector.load %arg2[%c0_2, %c0_3] : memref<4x8xf32, #tpu.memory_space<vmem>>, vector<4x8xf32>
    %cst = arith.constant dense<0.000000e+00> : vector<256x8xf32>
    %3 = tpu.matmul %1, %2, %cst {dimension_numbers = #tpu.dot_dimension_numbers<[1], [0], [0], [1], [0, 0, 1, 1], [], []>} : vector<256x4xf32>, vector<4x8xf32>, vector<256x8xf32> -> vector<256x8xf32>
    %c0_4 = arith.constant 0 : index
    %c0_5 = arith.constant 0 : index
    %4 = vector.load %arg3[%c0_4, %c0_5] : memref<1x8xf32, #tpu.memory_space<vmem>>, vector<1x8xf32>
    %5 = vector.broadcast %4 : vector<1x8xf32> to vector<256x8xf32>
    %6 = arith.addf %3, %5 : vector<256x8xf32>
    %cst_6 = arith.constant 0.000000e+00 : f32
    %7 = vector.broadcast %cst_6 : f32 to vector<256x8xf32>
    %8 = arith.maximumf %6, %7 : vector<256x8xf32>
    %9 = tpu.iota {dimensions = array<i32: 0>} : vector<256x1xi32>
    %c16_i32 = arith.constant 16 : i32
    %c0_i32 = arith.constant 0 : i32
    %10 = arith.cmpi eq, %c16_i32, %c0_i32 : i32
    %c1_i32 = arith.constant 1 : i32
    %11 = arith.select %10, %c1_i32, %c16_i32 : i32
    %12 = vector.broadcast %11 : i32 to vector<256x1xi32>
    %13 = arith.remsi %9, %12 : vector<256x1xi32>
    %c0_i32_7 = arith.constant 0 : i32
    %14 = vector.broadcast %c0_i32_7 : i32 to vector<256x1xi32>
    %15 = arith.cmpi ne, %13, %14 : vector<256x1xi32>
    %c0_i32_8 = arith.constant 0 : i32
    %16 = vector.broadcast %c0_i32_8 : i32 to vector<256x1xi32>
    %17 = arith.cmpi slt, %13, %16 : vector<256x1xi32>
    %c0_i32_9 = arith.constant 0 : i32
    %18 = arith.cmpi slt, %11, %c0_i32_9 : i32
    %19 = vector.broadcast %18 : i1 to vector<256x1xi1>
    %20 = vector.broadcast %19 : vector<256x1xi1> to vector<256x1xi1>
    %21 = arith.xori %17, %20 : vector<256x1xi1>
    %22 = arith.andi %21, %15 : vector<256x1xi1>
    %23 = vector.broadcast %11 : i32 to vector<256x1xi32>
    %24 = arith.addi %13, %23 : vector<256x1xi32>
    %25 = arith.select %22, %24, %13 : vector<256x1xi1>, vector<256x1xi32>
    %c1_i32_10 = arith.constant 1 : i32
    %26 = tpu.dynamic_rotate %8 by %c1_i32_10 dim 0 : vector<256x8xf32>, i32 -> vector<256x8xf32>
    %c255_i32 = arith.constant 255 : i32
    %27 = tpu.dynamic_rotate %8 by %c255_i32 dim 0 : vector<256x8xf32>, i32 -> vector<256x8xf32>
    %c0_i32_11 = arith.constant 0 : i32
    %28 = vector.broadcast %c0_i32_11 : i32 to vector<256x1xi32>
    %29 = arith.cmpi eq, %25, %28 : vector<256x1xi32>
    %cst_12 = arith.constant 0.000000e+00 : f32
    %30 = vector.shape_cast %29 : vector<256x1xi1> to vector<256x1xi1>
    %31 = vector.broadcast %30 : vector<256x1xi1> to vector<256x8xi1>
    %32 = vector.broadcast %cst_12 : f32 to vector<256x8xf32>
    %33 = arith.select %31, %32, %26 : vector<256x8xi1>, vector<256x8xf32>
    %c15_i32 = arith.constant 15 : i32
    %34 = vector.broadcast %c15_i32 : i32 to vector<256x1xi32>
    %35 = arith.cmpi eq, %25, %34 : vector<256x1xi32>
    %cst_13 = arith.constant 0.000000e+00 : f32
    %36 = vector.shape_cast %35 : vector<256x1xi1> to vector<256x1xi1>
    %37 = vector.broadcast %36 : vector<256x1xi1> to vector<256x8xi1>
    %38 = vector.broadcast %cst_13 : f32 to vector<256x8xf32>
    %39 = arith.select %37, %38, %27 : vector<256x8xi1>, vector<256x8xf32>
    %40 = tpu.concatenate %8, %33, %39 in 1 : vector<256x8xf32>, vector<256x8xf32>, vector<256x8xf32> -> vector<256x24xf32>
    %cst_14 = arith.constant 0.000000e+00 : f32
    %41 = vector.broadcast %cst_14 : f32 to vector<16x24xf32>
    %c0_15 = arith.constant 0 : index
    %c0_16 = arith.constant 0 : index
    %42 = vector.load %arg7[%c0_15, %c0_16] : memref<288x24xf32, #tpu.memory_space<vmem>>, vector<16x24xf32>
    tpu.vector_store %arg7[%c0_15, %c0_16], %41 {strides = array<i32>} : memref<288x24xf32, #tpu.memory_space<vmem>>, vector<16x24xf32>,
    %c272 = arith.constant 272 : index
    %c0_17 = arith.constant 0 : index
    %43 = vector.load %arg7[%c272, %c0_17] : memref<288x24xf32, #tpu.memory_space<vmem>>, vector<16x24xf32>
    tpu.vector_store %arg7[%c272, %c0_17], %41 {strides = array<i32>} : memref<288x24xf32, #tpu.memory_space<vmem>>, vector<16x24xf32>,
    %c16 = arith.constant 16 : index
    %c0_18 = arith.constant 0 : index
    %44 = vector.load %arg7[%c16, %c0_18] : memref<288x24xf32, #tpu.memory_space<vmem>>, vector<256x24xf32>
    tpu.vector_store %arg7[%c16, %c0_18], %40 {strides = array<i32>} : memref<288x24xf32, #tpu.memory_space<vmem>>, vector<256x24xf32>,
    %c0_19 = arith.constant 0 : index
    %c0_20 = arith.constant 0 : index
    %c0_21 = arith.constant 0 : index
    %45 = vector.load %arg4[%c0_19, %c0_20, %c0_21] : memref<3x24x16xf32, #tpu.memory_space<vmem>>, vector<1x24x16xf32>
    %46 = vector.shape_cast %45 : vector<1x24x16xf32> to vector<24x16xf32>
    %c1 = arith.constant 1 : index
    %c0_22 = arith.constant 0 : index
    %c0_23 = arith.constant 0 : index
    %47 = vector.load %arg4[%c1, %c0_22, %c0_23] : memref<3x24x16xf32, #tpu.memory_space<vmem>>, vector<1x24x16xf32>
    %48 = vector.shape_cast %47 : vector<1x24x16xf32> to vector<24x16xf32>
    %c2 = arith.constant 2 : index
    %c0_24 = arith.constant 0 : index
    %c0_25 = arith.constant 0 : index
    %49 = vector.load %arg4[%c2, %c0_24, %c0_25] : memref<3x24x16xf32, #tpu.memory_space<vmem>>, vector<1x24x16xf32>
    %50 = vector.shape_cast %49 : vector<1x24x16xf32> to vector<24x16xf32>
    %c0_26 = arith.constant 0 : index
    %c0_27 = arith.constant 0 : index
    %51 = vector.load %arg5[%c0_26, %c0_27] : memref<1x16xf32, #tpu.memory_space<vmem>>, vector<1x16xf32>
    %c0_28 = arith.constant 0 : index
    %c0_29 = arith.constant 0 : index
    %52 = vector.load %arg7[%c0_28, %c0_29] : memref<288x24xf32, #tpu.memory_space<vmem>>, vector<256x24xf32>
    %c16_30 = arith.constant 16 : index
    %c0_31 = arith.constant 0 : index
    %53 = vector.load %arg7[%c16_30, %c0_31] : memref<288x24xf32, #tpu.memory_space<vmem>>, vector<256x24xf32>
    %c32 = arith.constant 32 : index
    %c0_32 = arith.constant 0 : index
    %54 = vector.load %arg7[%c32, %c0_32] : memref<288x24xf32, #tpu.memory_space<vmem>>, vector<256x24xf32>
    %cst_33 = arith.constant dense<0.000000e+00> : vector<256x16xf32>
    %55 = tpu.matmul %53, %48, %cst_33 {dimension_numbers = #tpu.dot_dimension_numbers<[1], [0], [0], [1], [0, 0, 1, 1], [], []>} : vector<256x24xf32>, vector<24x16xf32>, vector<256x16xf32> -> vector<256x16xf32>
    %cst_34 = arith.constant dense<0.000000e+00> : vector<256x16xf32>
    %56 = tpu.matmul %52, %46, %cst_34 {dimension_numbers = #tpu.dot_dimension_numbers<[1], [0], [0], [1], [0, 0, 1, 1], [], []>} : vector<256x24xf32>, vector<24x16xf32>, vector<256x16xf32> -> vector<256x16xf32>
    %57 = arith.addf %55, %56 : vector<256x16xf32>
    %cst_35 = arith.constant dense<0.000000e+00> : vector<256x16xf32>
    %58 = tpu.matmul %54, %50, %cst_35 {dimension_numbers = #tpu.dot_dimension_numbers<[1], [0], [0], [1], [0, 0, 1, 1], [], []>} : vector<256x24xf32>, vector<24x16xf32>, vector<256x16xf32> -> vector<256x16xf32>
    %59 = arith.addf %57, %58 : vector<256x16xf32>
    %60 = vector.broadcast %51 : vector<1x16xf32> to vector<256x16xf32>
    %61 = arith.addf %59, %60 : vector<256x16xf32>
    %cst_36 = arith.constant 0.000000e+00 : f32
    %62 = vector.broadcast %cst_36 : f32 to vector<256x16xf32>
    %63 = arith.maximumf %61, %62 : vector<256x16xf32>
    %c0_37 = arith.constant 0 : index
    %c0_38 = arith.constant 0 : index
    %c0_39 = arith.constant 0 : index
    %64 = vector.load %arg6[%c0_37, %c0_38, %c0_39] : memref<1x256x16xf32, #tpu.memory_space<vmem>>, vector<1x256x16xf32>
    %65 = vector.shape_cast %64 : vector<1x256x16xf32> to vector<256x16xf32>
    %66 = vector.shape_cast %63 : vector<256x16xf32> to vector<1x256x16xf32>
    tpu.vector_store %arg6[%c0_37, %c0_38, %c0_39], %66 {strides = array<i32>} : memref<1x256x16xf32, #tpu.memory_space<vmem>>, vector<1x256x16xf32>,
    return
  }
  func.func @transform_0(%arg0: i32) -> (i32, i32, i32) {
    %c0_i32 = arith.constant 0 : i32
    %c0_i32_0 = arith.constant 0 : i32
    %c0_i32_1 = arith.constant 0 : i32
    return %arg0, %c0_i32, %c0_i32_0 : i32, i32, i32
  }
  func.func @transform_1(%arg0: i32) -> (i32, i32) {
    %c0_i32 = arith.constant 0 : i32
    %c0_i32_0 = arith.constant 0 : i32
    %c0_i32_1 = arith.constant 0 : i32
    return %c0_i32, %c0_i32_0 : i32, i32
  }
  func.func @transform_2(%arg0: i32) -> (i32, i32) {
    %c0_i32 = arith.constant 0 : i32
    %c0_i32_0 = arith.constant 0 : i32
    %c0_i32_1 = arith.constant 0 : i32
    return %c0_i32, %c0_i32_0 : i32, i32
  }
  func.func @transform_3(%arg0: i32) -> (i32, i32, i32) {
    %c0_i32 = arith.constant 0 : i32
    %c0_i32_0 = arith.constant 0 : i32
    %c0_i32_1 = arith.constant 0 : i32
    %c0_i32_2 = arith.constant 0 : i32
    return %c0_i32, %c0_i32_0, %c0_i32_1 : i32, i32, i32
  }
  func.func @transform_4(%arg0: i32) -> (i32, i32) {
    %c0_i32 = arith.constant 0 : i32
    %c0_i32_0 = arith.constant 0 : i32
    %c0_i32_1 = arith.constant 0 : i32
    return %c0_i32, %c0_i32_0 : i32, i32
  }
  func.func @transform_5(%arg0: i32) -> (i32, i32, i32) {
    %c0_i32 = arith.constant 0 : i32
    %c0_i32_0 = arith.constant 0 : i32
    %c0_i32_1 = arith.constant 0 : i32
    return %arg0, %c0_i32, %c0_i32_0 : i32, i32, i32
  }
}

</mosaic_0001>

<llo_original>
// kernel: _fire_forward.1
$region0: #{_fire_forward.1}
  #allocation0 [shape = 'u32[]', space=smem, size = 0x4, offset = 0x4, fixed_abs, tag = 'smem constant byte address 0x4 - core index']
  #allocation1 [shape = 'u32[144,128]{1,0:T(1,128)}', space=vmem, size = 0x12000, scoped, tag = 'internal scratch']
  #allocation2 [shape = 'f32[288,24]{1,0:T(8,128)}', space=vmem, size = 0x24000, scoped, tag = 'scratch operand']
  %s0 = inlined_call_operand.vmem [shape: f32[2,256,4], index: 0, kind: input, shape index: {}]
  %s1 = inlined_call_operand.vmem [shape: f32[4,8], index: 1, kind: input, shape index: {}]
  %s2 = inlined_call_operand.vmem [shape: f32[1,8], index: 2, kind: input, shape index: {}]
  %s3 = inlined_call_operand.vmem [shape: f32[3,24,16], index: 3, kind: input, shape index: {}]
  %s4 = inlined_call_operand.vmem [shape: f32[1,16], index: 4, kind: input, shape index: {}]
  %s5 = inlined_call_operand.vmem [shape: f32[2,256,16], index: 5, kind: output, shape index: {}]
  %s6 = sld [smem:[#allocation0]]
  $region53: #{_fire_forward.1} parent=0
    _
  %s8 = ssub.s32 1, %s6
  %s9 = scalar_select 0, %s8, %s6
  loop: start=0, step=1, limit=4
  $region2: #{_fire_forward.1} parent=0 // loop_pre_header
    _
  $region3: #{_fire_forward.1} parent=0 // loop_header
    %s11 = sphi 0, %s15
    %p12 = scmp.ge.s32.totalorder %s11, 4
    %s21 = sphi 0, %s23
    %s24 = sphi 0, %s21
    %s25 = sphi 0, %s24
    %s41 = sphi 0, %s25
    %s45 = sphi 0, %s45
    %s47 = sphi 0, %s45
    %s48 = sphi 0, %s47
    %s62 = sphi 0, %s48
    %s66 = sphi 0, %s66
    %s68 = sphi 0, %s66
    %s69 = sphi 0, %s68
    %s83 = sphi 0, %s69
    %s87 = sphi 0, %s87
    %s89 = sphi 0, %s87
    %s90 = sphi 0, %s89
    %s104 = sphi 0, %s90
    %s108 = sphi 0, %s108
    %s110 = sphi 0, %s108
    %s111 = sphi 0, %s110
    %s125 = sphi 0, %s111
    %s131 = sphi 0, %s133
    %s134 = sphi 0, %s131
    %s135 = sphi 0, %s134
    %s151 = sphi 0, %s135
  $region4: #{_fire_forward.1} parent=0 // loop_header_branch
    %14 = sbr.rel (%p12) target = $region8
  $region5: #{_fire_forward.1} parent=0 // loop_body
    %s16 = ssub.s32 %s11, 1
    %s17 = ssub.s32 %s11, 2
    %s18 = sadd.s32 %s11, 1
    %s19 = ssub.s32 %s11, %s18
    %p20 = scmp.eq.s32.totalorder %s19, 0
    %s22 = sadd.s32 %s21, 1
    %s23 = scalar_select %p20, %s21, %s22
    %p26 = pneg %p20
    %p27 = scmp.eq.s32.totalorder %s11, 1
    %p28 = por %p26, %p27
    %p29 = scmp.ne.s32.totalorder %s21, %s24
    %p30 = scmp.eq.s32.totalorder %s11, 0
    %p31 = por %p29, %p30
    %p32 = scmp.ne.s32.totalorder %s21, %s24
    %p33 = scmp.eq.s32.totalorder %s16, 1
    %p34 = por %p32, %p33
    %p35 = scmp.ne.s32.totalorder %s24, %s25
    %p36 = scmp.eq.s32.totalorder %s16, 0
    %p37 = por %p35, %p36
    %p38 = scmp.ne.s32.totalorder %s24, %s25
    %p39 = scmp.eq.s32.totalorder %s17, 1
    %p40 = por %p38, %p39
    %p42 = scmp.ne.s32.totalorder %s25, %s41
    %p43 = scmp.eq.s32.totalorder %s17, 0
    %p44 = por %p42, %p43
    %s46 = sadd.s32 %s45, 1
    %p49 = scmp.eq.s32.totalorder %s11, 1
    %p50 = scmp.ne.s32.totalorder %s45, %s47
    %p51 = scmp.eq.s32.totalorder %s11, 0
    %p52 = por %p50, %p51
    %p53 = scmp.ne.s32.totalorder %s45, %s47
    %p54 = scmp.eq.s32.totalorder %s16, 1
    %p55 = por %p53, %p54
    %p56 = scmp.ne.s32.totalorder %s47, %s48
    %p57 = scmp.eq.s32.totalorder %s16, 0
    %p58 = por %p56, %p57
    %p59 = scmp.ne.s32.totalorder %s47, %s48
    %p60 = scmp.eq.s32.totalorder %s17, 1
    %p61 = por %p59, %p60
    %p63 = scmp.ne.s32.totalorder %s48, %s62
    %p64 = scmp.eq.s32.totalorder %s17, 0
    %p65 = por %p63, %p64
    %s67 = sadd.s32 %s66, 1
    %p70 = scmp.eq.s32.totalorder %s11, 1
    %p71 = scmp.ne.s32.totalorder %s66, %s68
    %p72 = scmp.eq.s32.totalorder %s11, 0
    %p73 = por %p71, %p72
    %p74 = scmp.ne.s32.totalorder %s66, %s68
    %p75 = scmp.eq.s32.totalorder %s16, 1
    %p76 = por %p74, %p75
    %p77 = scmp.ne.s32.totalorder %s68, %s69
    %p78 = scmp.eq.s32.totalorder %s16, 0
    %p79 = por %p77, %p78
    %p80 = scmp.ne.s32.totalorder %s68, %s69
    %p81 = scmp.eq.s32.totalorder %s17, 1
    %p82 = por %p80, %p81
    %p84 = scmp.ne.s32.totalorder %s69, %s83
    %p85 = scmp.eq.s32.totalorder %s17, 0
    %p86 = por %p84, %p85
    %s88 = sadd.s32 %s87, 1
    %p91 = scmp.eq.s32.totalorder %s11, 1
    %p92 = scmp.ne.s32.totalorder %s87, %s89
    %p93 = scmp.eq.s32.totalorder %s11, 0
    %p94 = por %p92, %p93
    %p95 = scmp.ne.s32.totalorder %s87, %s89
    %p96 = scmp.eq.s32.totalorder %s16, 1
    %p97 = por %p95, %p96
    %p98 = scmp.ne.s32.totalorder %s89, %s90
    %p99 = scmp.eq.s32.totalorder %s16, 0
    %p100 = por %p98, %p99
    %p101 = scmp.ne.s32.totalorder %s89, %s90
    %p102 = scmp.eq.s32.totalorder %s17, 1
    %p103 = por %p101, %p102
    %p105 = scmp.ne.s32.totalorder %s90, %s104
    %p106 = scmp.eq.s32.totalorder %s17, 0
    %p107 = por %p105, %p106
    %s109 = sadd.s32 %s108, 1
    %p112 = scmp.eq.s32.totalorder %s11, 1
    %p113 = scmp.ne.s32.totalorder %s108, %s110
    %p114 = scmp.eq.s32.totalorder %s11, 0
    %p115 = por %p113, %p114
    %p116 = scmp.ne.s32.totalorder %s108, %s110
    %p117 = scmp.eq.s32.totalorder %s16, 1
    %p118 = por %p116, %p117
    %p119 = scmp.ne.s32.totalorder %s110, %s111
    %p120 = scmp.eq.s32.totalorder %s16, 0
    %p121 = por %p119, %p120
    %p122 = scmp.ne.s32.totalorder %s110, %s111
    %p123 = scmp.eq.s32.totalorder %s17, 1
    %p124 = por %p122, %p123
    %p126 = scmp.ne.s32.totalorder %s111, %s125
    %p127 = scmp.eq.s32.totalorder %s17, 0
    %p128 = por %p126, %p127
    %s129 = ssub.s32 %s11, %s18
    %p130 = scmp.eq.s32.totalorder %s129, 0
    %s132 = sadd.s32 %s131, 1
    %s133 = scalar_select %p130, %s131, %s132
    %p136 = pneg %p130
    %p137 = scmp.eq.s32.totalorder %s11, 1
    %p138 = por %p136, %p137
    %p139 = scmp.ne.s32.totalorder %s131, %s134
    %p140 = scmp.eq.s32.totalorder %s11, 0
    %p141 = por %p139, %p140
    %p142 = scmp.ne.s32.totalorder %s131, %s134
    %p143 = scmp.eq.s32.totalorder %s16, 1
    %p144 = por %p142, %p143
    %p145 = scmp.ne.s32.totalorder %s134, %s135
    %p146 = scmp.eq.s32.totalorder %s16, 0
    %p147 = por %p145, %p146
    %p148 = scmp.ne.s32.totalorder %s134, %s135
    %p149 = scmp.eq.s32.totalorder %s17, 1
    %p150 = por %p148, %p149
    %p152 = scmp.ne.s32.totalorder %s135, %s151
    %p153 = scmp.eq.s32.totalorder %s17, 0
    %p154 = por %p152, %p153
    %p155 = scmp.le.s32.totalorder 1, %s11
    %p156 = scmp.lt.s32.totalorder %s11, 3
    %p157 = pnand %p155, %p156
    %p158 = pneg %p157
    // Predicated region
    $region9: #{_fire_forward.1} parent=5 // pred_check
      _
    $region10: #{_fire_forward.1} parent=5 // pred_check_branch
      %160 = sbr.rel (%p157) target = $region12
    $region11: #{_fire_forward.1} parent=5 // pred_region
      %s161 = ssub.s32 %s11, 1
      // Predicated region
      $region13: #{_fire_forward.1} parent=11 // pred_check
        %p162 = pneg %p58
      $region14: #{_fire_forward.1} parent=11 // pred_check_branch
        %164 = sbr.rel (%p162) target = $region16
      $region15: #{_fire_forward.1} parent=11 // pred_region
        _
      $region16: #{_fire_forward.1} parent=11 // pred_fallthru
        _
      // Predicated region
      $region17: #{_fire_forward.1} parent=11 // pred_check
        %p165 = pneg %p79
      $region18: #{_fire_forward.1} parent=11 // pred_check_branch
        %167 = sbr.rel (%p165) target = $region20
      $region19: #{_fire_forward.1} parent=11 // pred_region
        _
      $region20: #{_fire_forward.1} parent=11 // pred_fallthru
        _
      // Predicated region
      $region21: #{_fire_forward.1} parent=11 // pred_check
        %p168 = pneg %p100
      $region22: #{_fire_forward.1} parent=11 // pred_check_branch
        %170 = sbr.rel (%p168) target = $region24
      $region23: #{_fire_forward.1} parent=11 // pred_region
        _
      $region24: #{_fire_forward.1} parent=11 // pred_fallthru
        _
      // Predicated region
      $region25: #{_fire_forward.1} parent=11 // pred_check
        %p171 = pneg %p121
      $region26: #{_fire_forward.1} parent=11 // pred_check_branch
        %173 = sbr.rel (%p171) target = $region28
      $region27: #{_fire_forward.1} parent=11 // pred_region
        _
      $region28: #{_fire_forward.1} parent=11 // pred_fallthru
        _
    $region12: #{_fire_forward.1} parent=5 // pred_fallthru
      _
    %p174 = scmp.lt.s32.totalorder %s11, 2
    // Predicated region
    $region29: #{_fire_forward.1} parent=5 // pred_check
      %p175 = pneg %p174
    $region30: #{_fire_forward.1} parent=5 // pred_check_branch
      %177 = sbr.rel (%p175) target = $region32
    $region31: #{_fire_forward.1} parent=5 // pred_region
      // Predicated region
      $region33: #{_fire_forward.1} parent=31 // pred_check
        %p178 = pneg %p31
      $region34: #{_fire_forward.1} parent=31 // pred_check_branch
        %180 = sbr.rel (%p178) target = $region36
      $region35: #{_fire_forward.1} parent=31 // pred_region
        %p181 = scmp.lt.s32.totalorder %s11, 1
        %s182 = scalar_select %p181, %s11, 1
        %s183 = smul.addr %s182, 32
        %s184 = smul.addr %s183, 8
        %s185 = scalar_lea.vmem %s0, %s184
      $region36: #{_fire_forward.1} parent=31 // pred_fallthru
        _
    $region32: #{_fire_forward.1} parent=5 // pred_fallthru
      _
    %p186 = scmp.le.s32.totalorder 1, %s11
    %p187 = scmp.lt.s32.totalorder %s11, 3
    %p188 = pnand %p186, %p187
    %p189 = pneg %p188
    // Predicated region
    $region37: #{_fire_forward.1} parent=5 // pred_check
      _
    $region38: #{_fire_forward.1} parent=5 // pred_check_branch
      %191 = sbr.rel (%p188) target = $region40
    $region39: #{_fire_forward.1} parent=5 // pred_region
      %s192 = ssub.s32 %s11, 1
      %p193 = scmp.lt.s32.totalorder %s16, 1
      %s194 = scalar_select %p193, %s16, 1
      %s195 = smul.addr %s194, 32
      %s196 = smul.addr %s195, 8
      %s197 = scalar_lea.vmem %s0, %s196
      %p198 = pneg %p37
      %p199 = pneg %p34
      %p200 = pneg %p58
      %p201 = pneg %p55
      %p202 = pneg %p79
      %p203 = pneg %p76
      %p204 = pneg %p100
      %p205 = pneg %p97
      %p206 = pneg %p121
      %p207 = pneg %p118
      %p208 = pneg %p147
      %p209 = pneg %p144
      %p210 = scmp.lt.s32.totalorder %s16, 1
      %s211 = scalar_select %p210, %s16, 1
      %s212 = smul.addr %s211, 32
      %s213 = smul.addr %s212, 8
      %s214 = scalar_lea.vmem %s5, %s213
      %p215 = scmp.lt.s32.totalorder %s16, 1
      %s216 = scalar_select %p215, %s16, 1
      %s217 = smul.addr %s216, 32
      %s218 = smul.addr %s217, 8
      %s219 = scalar_lea.vmem %s0, %s218
      %p220 = scmp.lt.s32.totalorder %s16, 1
      %s221 = scalar_select %p220, %s16, 1
      %s222 = smul.addr %s221, 32
      %s223 = smul.addr %s222, 8
      %s224 = scalar_lea.vmem %s5, %s223
      %v225 = vld [vmem:[%s219] sm:$0xff]
      %v226 = vld [vmem:[%s219 + $0x8] sm:$0xff]
      %v227 = vld [vmem:[%s219 + $0x10] sm:$0xff]
      %v228 = vld [vmem:[%s219 + $0x18] sm:$0xff]
      %v229 = vld [vmem:[%s219 + $0x20] sm:$0xff]
      %v230 = vld [vmem:[%s219 + $0x28] sm:$0xff]
      %v231 = vld [vmem:[%s219 + $0x30] sm:$0xff]
      %v232 = vld [vmem:[%s219 + $0x38] sm:$0xff]
      %v233 = vld [vmem:[%s219 + $0x40] sm:$0xff]
      %v234 = vld [vmem:[%s219 + $0x48] sm:$0xff]
      %v235 = vld [vmem:[%s219 + $0x50] sm:$0xff]
      %v236 = vld [vmem:[%s219 + $0x58] sm:$0xff]
      %v237 = vld [vmem:[%s219 + $0x60] sm:$0xff]
      %v238 = vld [vmem:[%s219 + $0x68] sm:$0xff]
      %v239 = vld [vmem:[%s219 + $0x70] sm:$0xff]
      %v240 = vld [vmem:[%s219 + $0x78] sm:$0xff]
      %v241 = vld [vmem:[%s219 + $0x80] sm:$0xff]
      %v242 = vld [vmem:[%s219 + $0x88] sm:$0xff]
      %v243 = vld [vmem:[%s219 + $0x90] sm:$0xff]
      %v244 = vld [vmem:[%s219 + $0x98] sm:$0xff]
      %v245 = vld [vmem:[%s219 + $0xa0] sm:$0xff]
      %v246 = vld [vmem:[%s219 + $0xa8] sm:$0xff]
      %v247 = vld [vmem:[%s219 + $0xb0] sm:$0xff]
      %v248 = vld [vmem:[%s219 + $0xb8] sm:$0xff]
      %v249 = vld [vmem:[%s219 + $0xc0] sm:$0xff]
      %v250 = vld [vmem:[%s219 + $0xc8] sm:$0xff]
      %v251 = vld [vmem:[%s219 + $0xd0] sm:$0xff]
      %v252 = vld [vmem:[%s219 + $0xd8] sm:$0xff]
      %v253 = vld [vmem:[%s219 + $0xe0] sm:$0xff]
      %v254 = vld [vmem:[%s219 + $0xe8] sm:$0xff]
      %v255 = vld [vmem:[%s219 + $0xf0] sm:$0xff]
      %v256 = vld [vmem:[%s219 + $0xf8] sm:$0xff]
      %v257 = vld [vmem:[%s1] sm:$0xf]
      %v258 = vld [vmem:[%s2] sm:$0x1]
      %v260 = vlaneseq
      %v261 = vshrl.u32 %v260, 7
      %v262 = vsub.s32 0, %v261
      %v263 = vrot.slane %v258, %v262
      %vm265 = vcmask 31744
      %v267 = vsel %vm265, %v225, 0
      %v270 = vsel %vm265, %v226, 0
      %v273 = vsel %vm265, %v227, 0
      %v276 = vsel %vm265, %v228, 0
      %v279 = vsel %vm265, %v229, 0
      %v282 = vsel %vm265, %v230, 0
      %v285 = vsel %vm265, %v231, 0
      %v288 = vsel %vm265, %v232, 0
      %v291 = vsel %vm265, %v233, 0
      %v294 = vsel %vm265, %v234, 0
      %v297 = vsel %vm265, %v235, 0
      %v300 = vsel %vm265, %v236, 0
      %v303 = vsel %vm265, %v237, 0
      %v306 = vsel %vm265, %v238, 0
      %v309 = vsel %vm265, %v239, 0
      %v312 = vsel %vm265, %v240, 0
      %v315 = vsel %vm265, %v241, 0
      %v318 = vsel %vm265, %v242, 0
      %v321 = vsel %vm265, %v243, 0
      %v324 = vsel %vm265, %v244, 0
      %v327 = vsel %vm265, %v245, 0
      %v330 = vsel %vm265, %v246, 0
      %v333 = vsel %vm265, %v247, 0
      %v336 = vsel %vm265, %v248, 0
      %v339 = vsel %vm265, %v249, 0
      %v342 = vsel %vm265, %v250, 0
      %v345 = vsel %vm265, %v251, 0
      %v348 = vsel %vm265, %v252, 0
      %v351 = vsel %vm265, %v253, 0
      %v354 = vsel %vm265, %v254, 0
      %v357 = vsel %vm265, %v255, 0
      %v360 = vsel %vm265, %v256, 0
      %vm362 = vcmask 1043456
      %v364 = vsel %vm362, %v257, 0
      %366 = vmatprep.subr.mxu0 0.0
      %367 = vmatpush1.msra.mxu0 0.0
      %368 = vmatprep.subr.mxu0 0.0
      %369 = vmatpush1.msra.mxu0 0.0
      %370 = vmatprep.subr.mxu0 0.0
      %371 = vmatpush1.msra.mxu0 0.0
      %372 = vmatprep.subr.mxu0 0.0
      %373 = vmatpush1.msra.mxu0 0.0
      %374 = vmatprep.subr.mxu0 0.0
      %375 = vmatpush1.msra.mxu0 0.0
      %376 = vmatprep.subr.mxu0 0.0
      %377 = vmatpush1.msra.mxu0 0.0
      %378 = vmatprep.subr.mxu0 0.0
      %379 = vmatpush1.msra.mxu0 0.0
      %380 = vmatprep.subr.mxu0 0.0
      %381 = vmatpush1.msra.mxu0 0.0
      %382 = vmatprep.subr.mxu0 0.0
      %383 = vmatpush1.msra.mxu0 0.0
      %384 = vmatprep.subr.mxu0 0.0
      %385 = vmatpush1.msra.mxu0 0.0
      %386 = vmatprep.subr.mxu0 0.0
      %387 = vmatpush1.msra.mxu0 0.0
      %388 = vmatprep.subr.mxu0 0.0
      %389 = vmatpush1.msra.mxu0 0.0
      %390 = vmatprep.subr.mxu0 0.0
      %391 = vmatpush1.msra.mxu0 0.0
      %392 = vmatprep.subr.mxu0 0.0
      %393 = vmatpush1.msra.mxu0 0.0
      %394 = vmatprep.subr.mxu0 0.0
      %395 = vmatpush1.msra.mxu0 0.0
      %396 = vmatprep.subr.mxu0 0.0
      %397 = vmatpush1.msra.mxu0 %v364
      %398 = vmatprep.subr.mxu0 0.0
      %399 = vmatpush2.msra.mxu0 0.0
      %400 = vmatprep.subr.mxu0 0.0
      %401 = vmatpush2.msra.mxu0 0.0
      %402 = vmatprep.subr.mxu0 0.0
      %403 = vmatpush2.msra.mxu0 0.0
      %404 = vmatprep.subr.mxu0 0.0
      %405 = vmatpush2.msra.mxu0 0.0
      %406 = vmatprep.subr.mxu0 0.0
      %407 = vmatpush2.msra.mxu0 0.0
      %408 = vmatprep.subr.mxu0 0.0
      %409 = vmatpush2.msra.mxu0 0.0
      %410 = vmatprep.subr.mxu0 0.0
      %411 = vmatpush2.msra.mxu0 0.0
      %412 = vmatprep.subr.mxu0 0.0
      %413 = vmatpush2.msra.mxu0 0.0
      %414 = vmatprep.subr.mxu0 0.0
      %415 = vmatpush2.msra.mxu0 0.0
      %416 = vmatprep.subr.mxu0 0.0
      %417 = vmatpush2.msra.mxu0 0.0
      %418 = vmatprep.subr.mxu0 0.0
      %419 = vmatpush2.msra.mxu0 0.0
      %420 = vmatprep.subr.mxu0 0.0
      %421 = vmatpush2.msra.mxu0 0.0
      %422 = vmatprep.subr.mxu0 0.0
      %423 = vmatpush2.msra.mxu0 0.0
      %424 = vmatprep.subr.mxu0 0.0
      %425 = vmatpush2.msra.mxu0 0.0
      %426 = vmatprep.subr.mxu0 0.0
      %427 = vmatpush2.msra.mxu0 0.0
      %428 = vmatprep.subr.mxu0 0.0
      %429 = vmatpush2.msra.mxu0 0.0
      %430 = vmatprep.mubr.f32.mxu0 0.0
      %431 = vmatmul.mubr.f32.gmra.mxu0 %v267
      %v432 = vpop.f32.mrf.mxu0
      %v433 = vadd.f32 %v263, %v432
      %v434 = vpop.f32.mrf.mxu0
      %435 = vmatprep.mubr.f32.mxu0 0.0
      %436 = vmatmul.mubr.f32.gmra.mxu0 %v270
      %v437 = vpop.f32.mrf.mxu0
      %v438 = vadd.f32 %v263, %v437
      %v439 = vpop.f32.mrf.mxu0
      %440 = vmatprep.mubr.f32.mxu0 0.0
      %441 = vmatmul.mubr.f32.gmra.mxu0 %v273
      %v442 = vpop.f32.mrf.mxu0
      %v443 = vadd.f32 %v263, %v442
      %v444 = vpop.f32.mrf.mxu0
      %445 = vmatprep.mubr.f32.mxu0 0.0
      %446 = vmatmul.mubr.f32.gmra.mxu0 %v276
      %v447 = vpop.f32.mrf.mxu0
      %v448 = vadd.f32 %v263, %v447
      %v449 = vpop.f32.mrf.mxu0
      %450 = vmatprep.mubr.f32.mxu0 0.0
      %451 = vmatmul.mubr.f32.gmra.mxu0 %v279
      %v452 = vpop.f32.mrf.mxu0
      %v453 = vadd.f32 %v263, %v452
      %v454 = vpop.f32.mrf.mxu0
      %455 = vmatprep.mubr.f32.mxu0 0.0
      %456 = vmatmul.mubr.f32.gmra.mxu0 %v282
      %v457 = vpop.f32.mrf.mxu0
      %v458 = vadd.f32 %v263, %v457
      %v459 = vpop.f32.mrf.mxu0
      %460 = vmatprep.mubr.f32.mxu0 0.0
      %461 = vmatmul.mubr.f32.gmra.mxu0 %v285
      %v462 = vpop.f32.mrf.mxu0
      %v463 = vadd.f32 %v263, %v462
      %v464 = vpop.f32.mrf.mxu0
      %465 = vmatprep.mubr.f32.mxu0 0.0
      %466 = vmatmul.mubr.f32.gmra.mxu0 %v288
      %v467 = vpop.f32.mrf.mxu0
      %v468 = vadd.f32 %v263, %v467
      %v469 = vpop.f32.mrf.mxu0
      %470 = vmatprep.mubr.f32.mxu0 0.0
      %471 = vmatmul.mubr.f32.gmra.mxu0 %v291
      %v472 = vpop.f32.mrf.mxu0
      %v473 = vadd.f32 %v263, %v472
      %v474 = vpop.f32.mrf.mxu0
      %475 = vmatprep.mubr.f32.mxu0 0.0
      %476 = vmatmul.mubr.f32.gmra.mxu0 %v294
      %v477 = vpop.f32.mrf.mxu0
      %v478 = vadd.f32 %v263, %v477
      %v479 = vpop.f32.mrf.mxu0
      %480 = vmatprep.mubr.f32.mxu0 0.0
      %481 = vmatmul.mubr.f32.gmra.mxu0 %v297
      %v482 = vpop.f32.mrf.mxu0
      %v483 = vadd.f32 %v263, %v482
      %v484 = vpop.f32.mrf.mxu0
      %485 = vmatprep.mubr.f32.mxu0 0.0
      %486 = vmatmul.mubr.f32.gmra.mxu0 %v300
      %v487 = vpop.f32.mrf.mxu0
      %v488 = vadd.f32 %v263, %v487
      %v489 = vpop.f32.mrf.mxu0
      %490 = vmatprep.mubr.f32.mxu0 0.0
      %491 = vmatmul.mubr.f32.gmra.mxu0 %v303
      %v492 = vpop.f32.mrf.mxu0
      %v493 = vadd.f32 %v263, %v492
      %v494 = vpop.f32.mrf.mxu0
      %495 = vmatprep.mubr.f32.mxu0 0.0
      %496 = vmatmul.mubr.f32.gmra.mxu0 %v306
      %v497 = vpop.f32.mrf.mxu0
      %v498 = vadd.f32 %v263, %v497
      %v499 = vpop.f32.mrf.mxu0
      %500 = vmatprep.mubr.f32.mxu0 0.0
      %501 = vmatmul.mubr.f32.gmra.mxu0 %v309
      %v502 = vpop.f32.mrf.mxu0
      %v503 = vadd.f32 %v263, %v502
      %v504 = vpop.f32.mrf.mxu0
      %505 = vmatprep.mubr.f32.mxu0 0.0
      %506 = vmatmul.mubr.f32.gmra.mxu0 %v312
      %v507 = vpop.f32.mrf.mxu0
      %v508 = vadd.f32 %v263, %v507
      %v509 = vpop.f32.mrf.mxu0
      %510 = vmatprep.mubr.f32.mxu0 0.0
      %511 = vmatmul.mubr.f32.gmra.mxu0 %v315
      %v512 = vpop.f32.mrf.mxu0
      %v513 = vadd.f32 %v263, %v512
      %v514 = vpop.f32.mrf.mxu0
      %515 = vmatprep.mubr.f32.mxu0 0.0
      %516 = vmatmul.mubr.f32.gmra.mxu0 %v318
      %v517 = vpop.f32.mrf.mxu0
      %v518 = vadd.f32 %v263, %v517
      %v519 = vpop.f32.mrf.mxu0
      %520 = vmatprep.mubr.f32.mxu0 0.0
      %521 = vmatmul.mubr.f32.gmra.mxu0 %v321
      %v522 = vpop.f32.mrf.mxu0
      %v523 = vadd.f32 %v263, %v522
      %v524 = vpop.f32.mrf.mxu0
      %525 = vmatprep.mubr.f32.mxu0 0.0
      %526 = vmatmul.mubr.f32.gmra.mxu0 %v324
      %v527 = vpop.f32.mrf.mxu0
      %v528 = vadd.f32 %v263, %v527
      %v529 = vpop.f32.mrf.mxu0
      %530 = vmatprep.mubr.f32.mxu0 0.0
      %531 = vmatmul.mubr.f32.gmra.mxu0 %v327
      %v532 = vpop.f32.mrf.mxu0
      %v533 = vadd.f32 %v263, %v532
      %v534 = vpop.f32.mrf.mxu0
      %535 = vmatprep.mubr.f32.mxu0 0.0
      %536 = vmatmul.mubr.f32.gmra.mxu0 %v330
      %v537 = vpop.f32.mrf.mxu0
      %v538 = vadd.f32 %v263, %v537
      %v539 = vpop.f32.mrf.mxu0
      %540 = vmatprep.mubr.f32.mxu0 0.0
      %541 = vmatmul.mubr.f32.gmra.mxu0 %v333
      %v542 = vpop.f32.mrf.mxu0
      %v543 = vadd.f32 %v263, %v542
      %v544 = vpop.f32.mrf.mxu0
      %545 = vmatprep.mubr.f32.mxu0 0.0
      %546 = vmatmul.mubr.f32.gmra.mxu0 %v336
      %v547 = vpop.f32.mrf.mxu0
      %v548 = vadd.f32 %v263, %v547
      %v549 = vpop.f32.mrf.mxu0
      %550 = vmatprep.mubr.f32.mxu0 0.0
      %551 = vmatmul.mubr.f32.gmra.mxu0 %v339
      %v552 = vpop.f32.mrf.mxu0
      %v553 = vadd.f32 %v263, %v552
      %v554 = vpop.f32.mrf.mxu0
      %555 = vmatprep.mubr.f32.mxu0 0.0
      %556 = vmatmul.mubr.f32.gmra.mxu0 %v342
      %v557 = vpop.f32.mrf.mxu0
      %v558 = vadd.f32 %v263, %v557
      %v559 = vpop.f32.mrf.mxu0
      %560 = vmatprep.mubr.f32.mxu0 0.0
      %561 = vmatmul.mubr.f32.gmra.mxu0 %v345
      %v562 = vpop.f32.mrf.mxu0
      %v563 = vadd.f32 %v263, %v562
      %v564 = vpop.f32.mrf.mxu0
      %565 = vmatprep.mubr.f32.mxu0 0.0
      %566 = vmatmul.mubr.f32.gmra.mxu0 %v348
      %v567 = vpop.f32.mrf.mxu0
      %v568 = vadd.f32 %v263, %v567
      %v569 = vpop.f32.mrf.mxu0
      %570 = vmatprep.mubr.f32.mxu0 0.0
      %571 = vmatmul.mubr.f32.gmra.mxu0 %v351
      %v572 = vpop.f32.mrf.mxu0
      %v573 = vadd.f32 %v263, %v572
      %v574 = vpop.f32.mrf.mxu0
      %575 = vmatprep.mubr.f32.mxu0 0.0
      %576 = vmatmul.mubr.f32.gmra.mxu0 %v354
      %v577 = vpop.f32.mrf.mxu0
      %v578 = vadd.f32 %v263, %v577
      %v579 = vpop.f32.mrf.mxu0
      %580 = vmatprep.mubr.f32.mxu0 0.0
      %581 = vmatmul.mubr.f32.gmra.mxu0 %v357
      %v582 = vpop.f32.mrf.mxu0
      %v583 = vadd.f32 %v263, %v582
      %v584 = vpop.f32.mrf.mxu0
      %585 = vmatprep.mubr.f32.mxu0 0.0
      %586 = vmatmul.mubr.f32.gmra.mxu0 %v360
      %v587 = vpop.f32.mrf.mxu0
      %v588 = vadd.f32 %v263, %v587
      %v589 = vpop.f32.mrf.mxu0
      %590 = vdwg.mxu0
      %v591 = vmax.f32 %v433, 0.0
      %v592 = vmax.f32 %v438, 0.0
      %v593 = vmax.f32 %v443, 0.0
      %v594 = vmax.f32 %v448, 0.0
      %v595 = vmax.f32 %v453, 0.0
      %v596 = vmax.f32 %v458, 0.0
      %v597 = vmax.f32 %v463, 0.0
      %v598 = vmax.f32 %v468, 0.0
      %v599 = vmax.f32 %v473, 0.0
      %v600 = vmax.f32 %v478, 0.0
      %v601 = vmax.f32 %v483, 0.0
      %v602 = vmax.f32 %v488, 0.0
      %v603 = vmax.f32 %v493, 0.0
      %v604 = vmax.f32 %v498, 0.0
      %v605 = vmax.f32 %v503, 0.0
      %v606 = vmax.f32 %v508, 0.0
      %v607 = vmax.f32 %v513, 0.0
      %v608 = vmax.f32 %v518, 0.0
      %v609 = vmax.f32 %v523, 0.0
      %v610 = vmax.f32 %v528, 0.0
      %v611 = vmax.f32 %v533, 0.0
      %v612 = vmax.f32 %v538, 0.0
      %v613 = vmax.f32 %v543, 0.0
      %v614 = vmax.f32 %v548, 0.0
      %v615 = vmax.f32 %v553, 0.0
      %v616 = vmax.f32 %v558, 0.0
      %v617 = vmax.f32 %v563, 0.0
      %v618 = vmax.f32 %v568, 0.0
      %v619 = vmax.f32 %v573, 0.0
      %v620 = vmax.f32 %v578, 0.0
      %v621 = vmax.f32 %v583, 0.0
      %v622 = vmax.f32 %v588, 0.0
      %v623 = vlaneseq
      %v624 = vshrl.u32 %v623, 7
      %v625 = vadd.s32 %v624, 8
      %v626 = vadd.s32 %v624, 16
      %v627 = vadd.s32 %v624, 24
      %v628 = vadd.s32 %v624, 32
      %v629 = vadd.s32 %v624, 40
      %v630 = vadd.s32 %v624, 48
      %v631 = vadd.s32 %v624, 56
      %v632 = vadd.s32 %v624, 64
      %v633 = vadd.s32 %v624, 72
      %v634 = vadd.s32 %v624, 80
      %v635 = vadd.s32 %v624, 88
      %v636 = vadd.s32 %v624, 96
      %v637 = vadd.s32 %v624, 104
      %v638 = vadd.s32 %v624, 112
      %v639 = vadd.s32 %v624, 120
      %v640 = vadd.s32 %v624, 128
      %v641 = vadd.s32 %v624, 136
      %v642 = vadd.s32 %v624, 144
      %v643 = vadd.s32 %v624, 152
      %v644 = vadd.s32 %v624, 160
      %v645 = vadd.s32 %v624, 168
      %v646 = vadd.s32 %v624, 176
      %v647 = vadd.s32 %v624, 184
      %v648 = vadd.s32 %v624, 192
      %v649 = vadd.s32 %v624, 200
      %v650 = vadd.s32 %v624, 208
      %v651 = vadd.s32 %v624, 216
      %v652 = vadd.s32 %v624, 224
      %v653 = vadd.s32 %v624, 232
      %v654 = vadd.s32 %v624, 240
      %v655 = vadd.s32 %v624, 248
      %vm656 = vcmp.lt.s32.totalorder %v624, 0
      %v657 = vsub.s32 0, %v624
      %v658 = vsel %vm656, %v657, %v624
      %v659 = vshrl.u32 %v658, 4
      %v660 = vand.u32 %v658, 15
      %v661 = vsub.s32 0, %v660
      %v662 = vsel %vm656, %v661, %v660
      %vm663 = vcmp.lt.s32.totalorder %v625, 0
      %v664 = vsub.s32 0, %v625
      %v665 = vsel %vm663, %v664, %v625
      %v666 = vshrl.u32 %v665, 4
      %v667 = vand.u32 %v665, 15
      %v668 = vsub.s32 0, %v667
      %v669 = vsel %vm663, %v668, %v667
      %vm670 = vcmp.lt.s32.totalorder %v626, 0
      %v671 = vsub.s32 0, %v626
      %v672 = vsel %vm670, %v671, %v626
      %v673 = vshrl.u32 %v672, 4
      %v674 = vand.u32 %v672, 15
      %v675 = vsub.s32 0, %v674
      %v676 = vsel %vm670, %v675, %v674
      %vm677 = vcmp.lt.s32.totalorder %v627, 0
      %v678 = vsub.s32 0, %v627
      %v679 = vsel %vm677, %v678, %v627
      %v680 = vshrl.u32 %v679, 4
      %v681 = vand.u32 %v679, 15
      %v682 = vsub.s32 0, %v681
      %v683 = vsel %vm677, %v682, %v681
      %vm684 = vcmp.lt.s32.totalorder %v628, 0
      %v685 = vsub.s32 0, %v628
      %v686 = vsel %vm684, %v685, %v628
      %v687 = vshrl.u32 %v686, 4
      %v688 = vand.u32 %v686, 15
      %v689 = vsub.s32 0, %v688
      %v690 = vsel %vm684, %v689, %v688
      %vm691 = vcmp.lt.s32.totalorder %v629, 0
      %v692 = vsub.s32 0, %v629
      %v693 = vsel %vm691, %v692, %v629
      %v694 = vshrl.u32 %v693, 4
      %v695 = vand.u32 %v693, 15
      %v696 = vsub.s32 0, %v695
      %v697 = vsel %vm691, %v696, %v695
      %vm698 = vcmp.lt.s32.totalorder %v630, 0
      %v699 = vsub.s32 0, %v630
      %v700 = vsel %vm698, %v699, %v630
      %v701 = vshrl.u32 %v700, 4
      %v702 = vand.u32 %v700, 15
      %v703 = vsub.s32 0, %v702
      %v704 = vsel %vm698, %v703, %v702
      %vm705 = vcmp.lt.s32.totalorder %v631, 0
      %v706 = vsub.s32 0, %v631
      %v707 = vsel %vm705, %v706, %v631
      %v708 = vshrl.u32 %v707, 4
      %v709 = vand.u32 %v707, 15
      %v710 = vsub.s32 0, %v709
      %v711 = vsel %vm705, %v710, %v709
      %vm712 = vcmp.lt.s32.totalorder %v632, 0
      %v713 = vsub.s32 0, %v632
      %v714 = vsel %vm712, %v713, %v632
      %v715 = vshrl.u32 %v714, 4
      %v716 = vand.u32 %v714, 15
      %v717 = vsub.s32 0, %v716
      %v718 = vsel %vm712, %v717, %v716
      %vm719 = vcmp.lt.s32.totalorder %v633, 0
      %v720 = vsub.s32 0, %v633
      %v721 = vsel %vm719, %v720, %v633
      %v722 = vshrl.u32 %v721, 4
      %v723 = vand.u32 %v721, 15
      %v724 = vsub.s32 0, %v723
      %v725 = vsel %vm719, %v724, %v723
      %vm726 = vcmp.lt.s32.totalorder %v634, 0
      %v727 = vsub.s32 0, %v634
      %v728 = vsel %vm726, %v727, %v634
      %v729 = vshrl.u32 %v728, 4
      %v730 = vand.u32 %v728, 15
      %v731 = vsub.s32 0, %v730
      %v732 = vsel %vm726, %v731, %v730
      %vm733 = vcmp.lt.s32.totalorder %v635, 0
      %v734 = vsub.s32 0, %v635
      %v735 = vsel %vm733, %v734, %v635
      %v736 = vshrl.u32 %v735, 4
      %v737 = vand.u32 %v735, 15
      %v738 = vsub.s32 0, %v737
      %v739 = vsel %vm733, %v738, %v737
      %vm740 = vcmp.lt.s32.totalorder %v636, 0
      %v741 = vsub.s32 0, %v636
      %v742 = vsel %vm740, %v741, %v636
      %v743 = vshrl.u32 %v742, 4
      %v744 = vand.u32 %v742, 15
      %v745 = vsub.s32 0, %v744
      %v746 = vsel %vm740, %v745, %v744
      %vm747 = vcmp.lt.s32.totalorder %v637, 0
      %v748 = vsub.s32 0, %v637
      %v749 = vsel %vm747, %v748, %v637
      %v750 = vshrl.u32 %v749, 4
      %v751 = vand.u32 %v749, 15
      %v752 = vsub.s32 0, %v751
      %v753 = vsel %vm747, %v752, %v751
      %vm754 = vcmp.lt.s32.totalorder %v638, 0
      %v755 = vsub.s32 0, %v638
      %v756 = vsel %vm754, %v755, %v638
      %v757 = vshrl.u32 %v756, 4
      %v758 = vand.u32 %v756, 15
      %v759 = vsub.s32 0, %v758
      %v760 = vsel %vm754, %v759, %v758
      %vm761 = vcmp.lt.s32.totalorder %v639, 0
      %v762 = vsub.s32 0, %v639
      %v763 = vsel %vm761, %v762, %v639
      %v764 = vshrl.u32 %v763, 4
      %v765 = vand.u32 %v763, 15
      %v766 = vsub.s32 0, %v765
      %v767 = vsel %vm761, %v766, %v765
      %vm768 = vcmp.lt.s32.totalorder %v640, 0
      %v769 = vsub.s32 0, %v640
      %v770 = vsel %vm768, %v769, %v640
      %v771 = vshrl.u32 %v770, 4
      %v772 = vand.u32 %v770, 15
      %v773 = vsub.s32 0, %v772
      %v774 = vsel %vm768, %v773, %v772
      %vm775 = vcmp.lt.s32.totalorder %v641, 0
      %v776 = vsub.s32 0, %v641
      %v777 = vsel %vm775, %v776, %v641
      %v778 = vshrl.u32 %v777, 4
      %v779 = vand.u32 %v777, 15
      %v780 = vsub.s32 0, %v779
      %v781 = vsel %vm775, %v780, %v779
      %vm782 = vcmp.lt.s32.totalorder %v642, 0
      %v783 = vsub.s32 0, %v642
      %v784 = vsel %vm782, %v783, %v642
      %v785 = vshrl.u32 %v784, 4
      %v786 = vand.u32 %v784, 15
      %v787 = vsub.s32 0, %v786
      %v788 = vsel %vm782, %v787, %v786
      %vm789 = vcmp.lt.s32.totalorder %v643, 0
      %v790 = vsub.s32 0, %v643
      %v791 = vsel %vm789, %v790, %v643
      %v792 = vshrl.u32 %v791, 4
      %v793 = vand.u32 %v791, 15
      %v794 = vsub.s32 0, %v793
      %v795 = vsel %vm789, %v794, %v793
      %vm796 = vcmp.lt.s32.totalorder %v644, 0
      %v797 = vsub.s32 0, %v644
      %v798 = vsel %vm796, %v797, %v644
      %v799 = vshrl.u32 %v798, 4
      %v800 = vand.u32 %v798, 15
      %v801 = vsub.s32 0, %v800
      %v802 = vsel %vm796, %v801, %v800
      %vm803 = vcmp.lt.s32.totalorder %v645, 0
      %v804 = vsub.s32 0, %v645
      %v805 = vsel %vm803, %v804, %v645
      %v806 = vshrl.u32 %v805, 4
      %v807 = vand.u32 %v805, 15
      %v808 = vsub.s32 0, %v807
      %v809 = vsel %vm803, %v808, %v807
      %vm810 = vcmp.lt.s32.totalorder %v646, 0
      %v811 = vsub.s32 0, %v646
      %v812 = vsel %vm810, %v811, %v646
      %v813 = vshrl.u32 %v812, 4
      %v814 = vand.u32 %v812, 15
      %v815 = vsub.s32 0, %v814
      %v816 = vsel %vm810, %v815, %v814
      %vm817 = vcmp.lt.s32.totalorder %v647, 0
      %v818 = vsub.s32 0, %v647
      %v819 = vsel %vm817, %v818, %v647
      %v820 = vshrl.u32 %v819, 4
      %v821 = vand.u32 %v819, 15
      %v822 = vsub.s32 0, %v821
      %v823 = vsel %vm817, %v822, %v821
      %vm824 = vcmp.lt.s32.totalorder %v648, 0
      %v825 = vsub.s32 0, %v648
      %v826 = vsel %vm824, %v825, %v648
      %v827 = vshrl.u32 %v826, 4
      %v828 = vand.u32 %v826, 15
      %v829 = vsub.s32 0, %v828
      %v830 = vsel %vm824, %v829, %v828
      %vm831 = vcmp.lt.s32.totalorder %v649, 0
      %v832 = vsub.s32 0, %v649
      %v833 = vsel %vm831, %v832, %v649
      %v834 = vshrl.u32 %v833, 4
      %v835 = vand.u32 %v833, 15
      %v836 = vsub.s32 0, %v835
      %v837 = vsel %vm831, %v836, %v835
      %vm838 = vcmp.lt.s32.totalorder %v650, 0
      %v839 = vsub.s32 0, %v650
      %v840 = vsel %vm838, %v839, %v650
      %v841 = vshrl.u32 %v840, 4
      %v842 = vand.u32 %v840, 15
      %v843 = vsub.s32 0, %v842
      %v844 = vsel %vm838, %v843, %v842
      %vm845 = vcmp.lt.s32.totalorder %v651, 0
      %v846 = vsub.s32 0, %v651
      %v847 = vsel %vm845, %v846, %v651
      %v848 = vshrl.u32 %v847, 4
      %v849 = vand.u32 %v847, 15
      %v850 = vsub.s32 0, %v849
      %v851 = vsel %vm845, %v850, %v849
      %vm852 = vcmp.lt.s32.totalorder %v652, 0
      %v853 = vsub.s32 0, %v652
      %v854 = vsel %vm852, %v853, %v652
      %v855 = vshrl.u32 %v854, 4
      %v856 = vand.u32 %v854, 15
      %v857 = vsub.s32 0, %v856
      %v858 = vsel %vm852, %v857, %v856
      %vm859 = vcmp.lt.s32.totalorder %v653, 0
      %v860 = vsub.s32 0, %v653
      %v861 = vsel %vm859, %v860, %v653
      %v862 = vshrl.u32 %v861, 4
      %v863 = vand.u32 %v861, 15
      %v864 = vsub.s32 0, %v863
      %v865 = vsel %vm859, %v864, %v863
      %vm866 = vcmp.lt.s32.totalorder %v654, 0
      %v867 = vsub.s32 0, %v654
      %v868 = vsel %vm866, %v867, %v654
      %v869 = vshrl.u32 %v868, 4
      %v870 = vand.u32 %v868, 15
      %v871 = vsub.s32 0, %v870
      %v872 = vsel %vm866, %v871, %v870
      %vm873 = vcmp.lt.s32.totalorder %v655, 0
      %v874 = vsub.s32 0, %v655
      %v875 = vsel %vm873, %v874, %v655
      %v876 = vshrl.u32 %v875, 4
      %v877 = vand.u32 %v875, 15
      %v878 = vsub.s32 0, %v877
      %v879 = vsel %vm873, %v878, %v877
      %vm880 = vcmp.ne.s32.totalorder %v662, 0
      %vm881 = vcmp.ne.s32.totalorder %v669, 0
      %vm882 = vcmp.ne.s32.totalorder %v676, 0
      %vm883 = vcmp.ne.s32.totalorder %v683, 0
      %vm884 = vcmp.ne.s32.totalorder %v690, 0
      %vm885 = vcmp.ne.s32.totalorder %v697, 0
      %vm886 = vcmp.ne.s32.totalorder %v704, 0
      %vm887 = vcmp.ne.s32.totalorder %v711, 0
      %vm888 = vcmp.ne.s32.totalorder %v718, 0
      %vm889 = vcmp.ne.s32.totalorder %v725, 0
      %vm890 = vcmp.ne.s32.totalorder %v732, 0
      %vm891 = vcmp.ne.s32.totalorder %v739, 0
      %vm892 = vcmp.ne.s32.totalorder %v746, 0
      %vm893 = vcmp.ne.s32.totalorder %v753, 0
      %vm894 = vcmp.ne.s32.totalorder %v760, 0
      %vm895 = vcmp.ne.s32.totalorder %v767, 0
      %vm896 = vcmp.ne.s32.totalorder %v774, 0
      %vm897 = vcmp.ne.s32.totalorder %v781, 0
      %vm898 = vcmp.ne.s32.totalorder %v788, 0
      %vm899 = vcmp.ne.s32.totalorder %v795, 0
      %vm900 = vcmp.ne.s32.totalorder %v802, 0
      %vm901 = vcmp.ne.s32.totalorder %v809, 0
      %vm902 = vcmp.ne.s32.totalorder %v816, 0
      %vm903 = vcmp.ne.s32.totalorder %v823, 0
      %vm904 = vcmp.ne.s32.totalorder %v830, 0
      %vm905 = vcmp.ne.s32.totalorder %v837, 0
      %vm906 = vcmp.ne.s32.totalorder %v844, 0
      %vm907 = vcmp.ne.s32.totalorder %v851, 0
      %vm908 = vcmp.ne.s32.totalorder %v858, 0
      %vm909 = vcmp.ne.s32.totalorder %v865, 0
      %vm910 = vcmp.ne.s32.totalorder %v872, 0
      %vm911 = vcmp.ne.s32.totalorder %v879, 0
      %vm912 = vcmp.lt.s32.totalorder %v662, 0
      %vm913 = vcmp.lt.s32.totalorder %v669, 0
      %vm914 = vcmp.lt.s32.totalorder %v676, 0
      %vm915 = vcmp.lt.s32.totalorder %v683, 0
      %vm916 = vcmp.lt.s32.totalorder %v690, 0
      %vm917 = vcmp.lt.s32.totalorder %v697, 0
      %vm918 = vcmp.lt.s32.totalorder %v704, 0
      %vm919 = vcmp.lt.s32.totalorder %v711, 0
      %vm920 = vcmp.lt.s32.totalorder %v718, 0
      %vm921 = vcmp.lt.s32.totalorder %v725, 0
      %vm922 = vcmp.lt.s32.totalorder %v732, 0
      %vm923 = vcmp.lt.s32.totalorder %v739, 0
      %vm924 = vcmp.lt.s32.totalorder %v746, 0
      %vm925 = vcmp.lt.s32.totalorder %v753, 0
      %vm926 = vcmp.lt.s32.totalorder %v760, 0
      %vm927 = vcmp.lt.s32.totalorder %v767, 0
      %vm928 = vcmp.lt.s32.totalorder %v774, 0
      %vm929 = vcmp.lt.s32.totalorder %v781, 0
      %vm930 = vcmp.lt.s32.totalorder %v788, 0
      %vm931 = vcmp.lt.s32.totalorder %v795, 0
      %vm932 = vcmp.lt.s32.totalorder %v802, 0
      %vm933 = vcmp.lt.s32.totalorder %v809, 0
      %vm934 = vcmp.lt.s32.totalorder %v816, 0
      %vm935 = vcmp.lt.s32.totalorder %v823, 0
      %vm936 = vcmp.lt.s32.totalorder %v830, 0
      %vm937 = vcmp.lt.s32.totalorder %v837, 0
      %vm938 = vcmp.lt.s32.totalorder %v844, 0
      %vm939 = vcmp.lt.s32.totalorder %v851, 0
      %vm940 = vcmp.lt.s32.totalorder %v858, 0
      %vm941 = vcmp.lt.s32.totalorder %v865, 0
      %vm942 = vcmp.lt.s32.totalorder %v872, 0
      %vm943 = vcmp.lt.s32.totalorder %v879, 0
      %vm944 = vmand %vm912, %vm880
      %vm945 = vmand %vm913, %vm881
      %vm946 = vmand %vm914, %vm882
      %vm947 = vmand %vm915, %vm883
      %vm948 = vmand %vm916, %vm884
      %vm949 = vmand %vm917, %vm885
      %vm950 = vmand %vm918, %vm886
      %vm951 = vmand %vm919, %vm887
      %vm952 = vmand %vm920, %vm888
      %vm953 = vmand %vm921, %vm889
      %vm954 = vmand %vm922, %vm890
      %vm955 = vmand %vm923, %vm891
      %vm956 = vmand %vm924, %vm892
      %vm957 = vmand %vm925, %vm893
      %vm958 = vmand %vm926, %vm894
      %vm959 = vmand %vm927, %vm895
      %vm960 = vmand %vm928, %vm896
      %vm961 = vmand %vm929, %vm897
      %vm962 = vmand %vm930, %vm898
      %vm963 = vmand %vm931, %vm899
      %vm964 = vmand %vm932, %vm900
      %vm965 = vmand %vm933, %vm901
      %vm966 = vmand %vm934, %vm902
      %vm967 = vmand %vm935, %vm903
      %vm968 = vmand %vm936, %vm904
      %vm969 = vmand %vm937, %vm905
      %vm970 = vmand %vm938, %vm906
      %vm971 = vmand %vm939, %vm907
      %vm972 = vmand %vm940, %vm908
      %vm973 = vmand %vm941, %vm909
      %vm974 = vmand %vm942, %vm910
      %vm975 = vmand %vm943, %vm911
      %v976 = vadd.s32 %v662, 16
      %v977 = vadd.s32 %v669, 16
      %v978 = vadd.s32 %v676, 16
      %v979 = vadd.s32 %v683, 16
      %v980 = vadd.s32 %v690, 16
      %v981 = vadd.s32 %v697, 16
      %v982 = vadd.s32 %v704, 16
      %v983 = vadd.s32 %v711, 16
      %v984 = vadd.s32 %v718, 16
      %v985 = vadd.s32 %v725, 16
      %v986 = vadd.s32 %v732, 16
      %v987 = vadd.s32 %v739, 16
      %v988 = vadd.s32 %v746, 16
      %v989 = vadd.s32 %v753, 16
      %v990 = vadd.s32 %v760, 16
      %v991 = vadd.s32 %v767, 16
      %v992 = vadd.s32 %v774, 16
      %v993 = vadd.s32 %v781, 16
      %v994 = vadd.s32 %v788, 16
      %v995 = vadd.s32 %v795, 16
      %v996 = vadd.s32 %v802, 16
      %v997 = vadd.s32 %v809, 16
      %v998 = vadd.s32 %v816, 16
      %v999 = vadd.s32 %v823, 16
      %v1000 = vadd.s32 %v830, 16
      %v1001 = vadd.s32 %v837, 16
      %v1002 = vadd.s32 %v844, 16
      %v1003 = vadd.s32 %v851, 16
      %v1004 = vadd.s32 %v858, 16
      %v1005 = vadd.s32 %v865, 16
      %v1006 = vadd.s32 %v872, 16
      %v1007 = vadd.s32 %v879, 16
      %v1008 = vsel %vm944, %v976, %v662
      %v1009 = vsel %vm945, %v977, %v669
      %v1010 = vsel %vm946, %v978, %v676
      %v1011 = vsel %vm947, %v979, %v683
      %v1012 = vsel %vm948, %v980, %v690
      %v1013 = vsel %vm949, %v981, %v697
      %v1014 = vsel %vm950, %v982, %v704
      %v1015 = vsel %vm951, %v983, %v711
      %v1016 = vsel %vm952, %v984, %v718
      %v1017 = vsel %vm953, %v985, %v725
      %v1018 = vsel %vm954, %v986, %v732
      %v1019 = vsel %vm955, %v987, %v739
      %v1020 = vsel %vm956, %v988, %v746
      %v1021 = vsel %vm957, %v989, %v753
      %v1022 = vsel %vm958, %v990, %v760
      %v1023 = vsel %vm959, %v991, %v767
      %v1024 = vsel %vm960, %v992, %v774
      %v1025 = vsel %vm961, %v993, %v781
      %v1026 = vsel %vm962, %v994, %v788
      %v1027 = vsel %vm963, %v995, %v795
      %v1028 = vsel %vm964, %v996, %v802
      %v1029 = vsel %vm965, %v997, %v809
      %v1030 = vsel %vm966, %v998, %v816
      %v1031 = vsel %vm967, %v999, %v823
      %v1032 = vsel %vm968, %v1000, %v830
      %v1033 = vsel %vm969, %v1001, %v837
      %v1034 = vsel %vm970, %v1002, %v844
      %v1035 = vsel %vm971, %v1003, %v851
      %v1036 = vsel %vm972, %v1004, %v858
      %v1037 = vsel %vm973, %v1005, %v865
      %v1038 = vsel %vm974, %v1006, %v872
      %v1039 = vsel %vm975, %v1007, %v879
      %v1040 = vrot.slane %v591, 7
      %v1041 = vrot.slane %v592, 7
      %v1042 = vrot.slane %v593, 7
      %v1043 = vrot.slane %v594, 7
      %v1044 = vrot.slane %v595, 7
      %v1045 = vrot.slane %v596, 7
      %v1046 = vrot.slane %v597, 7
      %v1047 = vrot.slane %v598, 7
      %v1048 = vrot.slane %v599, 7
      %v1049 = vrot.slane %v600, 7
      %v1050 = vrot.slane %v601, 7
      %v1051 = vrot.slane %v602, 7
      %v1052 = vrot.slane %v603, 7
      %v1053 = vrot.slane %v604, 7
      %v1054 = vrot.slane %v605, 7
      %v1055 = vrot.slane %v606, 7
      %v1056 = vrot.slane %v607, 7
      %v1057 = vrot.slane %v608, 7
      %v1058 = vrot.slane %v609, 7
      %v1059 = vrot.slane %v610, 7
      %v1060 = vrot.slane %v611, 7
      %v1061 = vrot.slane %v612, 7
      %v1062 = vrot.slane %v613, 7
      %v1063 = vrot.slane %v614, 7
      %v1064 = vrot.slane %v615, 7
      %v1065 = vrot.slane %v616, 7
      %v1066 = vrot.slane %v617, 7
      %v1067 = vrot.slane %v618, 7
      %v1068 = vrot.slane %v619, 7
      %v1069 = vrot.slane %v620, 7
      %v1070 = vrot.slane %v621, 7
      %v1071 = vrot.slane %v622, 7
      %vm1072 = vcmp.lt.s32.totalorder %v624, 1
      %v1073 = vsel %vm1072, %v1070, %v1071
      %v1074 = vsel %vm1072, %v1069, %v1070
      %v1075 = vsel %vm1072, %v1068, %v1069
      %v1076 = vsel %vm1072, %v1067, %v1068
      %v1077 = vsel %vm1072, %v1066, %v1067
      %v1078 = vsel %vm1072, %v1065, %v1066
      %v1079 = vsel %vm1072, %v1064, %v1065
      %v1080 = vsel %vm1072, %v1063, %v1064
      %v1081 = vsel %vm1072, %v1062, %v1063
      %v1082 = vsel %vm1072, %v1061, %v1062
      %v1083 = vsel %vm1072, %v1060, %v1061
      %v1084 = vsel %vm1072, %v1059, %v1060
      %v1085 = vsel %vm1072, %v1058, %v1059
      %v1086 = vsel %vm1072, %v1057, %v1058
      %v1087 = vsel %vm1072, %v1056, %v1057
      %v1088 = vsel %vm1072, %v1055, %v1056
      %v1089 = vsel %vm1072, %v1054, %v1055
      %v1090 = vsel %vm1072, %v1053, %v1054
      %v1091 = vsel %vm1072, %v1052, %v1053
      %v1092 = vsel %vm1072, %v1051, %v1052
      %v1093 = vsel %vm1072, %v1050, %v1051
      %v1094 = vsel %vm1072, %v1049, %v1050
      %v1095 = vsel %vm1072, %v1048, %v1049
      %v1096 = vsel %vm1072, %v1047, %v1048
      %v1097 = vsel %vm1072, %v1046, %v1047
      %v1098 = vsel %vm1072, %v1045, %v1046
      %v1099 = vsel %vm1072, %v1044, %v1045
      %v1100 = vsel %vm1072, %v1043, %v1044
      %v1101 = vsel %vm1072, %v1042, %v1043
      %v1102 = vsel %vm1072, %v1041, %v1042
      %v1103 = vsel %vm1072, %v1040, %v1041
      %v1104 = vsel %vm1072, %v1071, %v1040
      %v1105 = vrot.slane %v591, 1
      %v1106 = vrot.slane %v592, 1
      %v1107 = vrot.slane %v593, 1
      %v1108 = vrot.slane %v594, 1
      %v1109 = vrot.slane %v595, 1
      %v1110 = vrot.slane %v596, 1
      %v1111 = vrot.slane %v597, 1
      %v1112 = vrot.slane %v598, 1
      %v1113 = vrot.slane %v599, 1
      %v1114 = vrot.slane %v600, 1
      %v1115 = vrot.slane %v601, 1
      %v1116 = vrot.slane %v602, 1
      %v1117 = vrot.slane %v603, 1
      %v1118 = vrot.slane %v604, 1
      %v1119 = vrot.slane %v605, 1
      %v1120 = vrot.slane %v606, 1
      %v1121 = vrot.slane %v607, 1
      %v1122 = vrot.slane %v608, 1
      %v1123 = vrot.slane %v609, 1
      %v1124 = vrot.slane %v610, 1
      %v1125 = vrot.slane %v611, 1
      %v1126 = vrot.slane %v612, 1
      %v1127 = vrot.slane %v613, 1
      %v1128 = vrot.slane %v614, 1
      %v1129 = vrot.slane %v615, 1
      %v1130 = vrot.slane %v616, 1
      %v1131 = vrot.slane %v617, 1
      %v1132 = vrot.slane %v618, 1
      %v1133 = vrot.slane %v619, 1
      %v1134 = vrot.slane %v620, 1
      %v1135 = vrot.slane %v621, 1
      %v1136 = vrot.slane %v622, 1
      %vm1137 = vcmp.lt.s32.totalorder %v624, 7
      %v1138 = vsel %vm1137, %v1135, %v1136
      %v1139 = vsel %vm1137, %v1134, %v1135
      %v1140 = vsel %vm1137, %v1133, %v1134
      %v1141 = vsel %vm1137, %v1132, %v1133
      %v1142 = vsel %vm1137, %v1131, %v1132
      %v1143 = vsel %vm1137, %v1130, %v1131
      %v1144 = vsel %vm1137, %v1129, %v1130
      %v1145 = vsel %vm1137, %v1128, %v1129
      %v1146 = vsel %vm1137, %v1127, %v1128
      %v1147 = vsel %vm1137, %v1126, %v1127
      %v1148 = vsel %vm1137, %v1125, %v1126
      %v1149 = vsel %vm1137, %v1124, %v1125
      %v1150 = vsel %vm1137, %v1123, %v1124
      %v1151 = vsel %vm1137, %v1122, %v1123
      %v1152 = vsel %vm1137, %v1121, %v1122
      %v1153 = vsel %vm1137, %v1120, %v1121
      %v1154 = vsel %vm1137, %v1119, %v1120
      %v1155 = vsel %vm1137, %v1118, %v1119
      %v1156 = vsel %vm1137, %v1117, %v1118
      %v1157 = vsel %vm1137, %v1116, %v1117
      %v1158 = vsel %vm1137, %v1115, %v1116
      %v1159 = vsel %vm1137, %v1114, %v1115
      %v1160 = vsel %vm1137, %v1113, %v1114
      %v1161 = vsel %vm1137, %v1112, %v1113
      %v1162 = vsel %vm1137, %v1111, %v1112
      %v1163 = vsel %vm1137, %v1110, %v1111
      %v1164 = vsel %vm1137, %v1109, %v1110
      %v1165 = vsel %vm1137, %v1108, %v1109
      %v1166 = vsel %vm1137, %v1107, %v1108
      %v1167 = vsel %vm1137, %v1106, %v1107
      %v1168 = vsel %vm1137, %v1105, %v1106
      %v1169 = vsel %vm1137, %v1136, %v1105
      %vm1170 = vcmp.eq.s32.totalorder %v1008, 0
      %vm1171 = vcmp.eq.s32.totalorder %v1009, 0
      %vm1172 = vcmp.eq.s32.totalorder %v1010, 0
      %vm1173 = vcmp.eq.s32.totalorder %v1011, 0
      %vm1174 = vcmp.eq.s32.totalorder %v1012, 0
      %vm1175 = vcmp.eq.s32.totalorder %v1013, 0
      %vm1176 = vcmp.eq.s32.totalorder %v1014, 0
      %vm1177 = vcmp.eq.s32.totalorder %v1015, 0
      %vm1178 = vcmp.eq.s32.totalorder %v1016, 0
      %vm1179 = vcmp.eq.s32.totalorder %v1017, 0
      %vm1180 = vcmp.eq.s32.totalorder %v1018, 0
      %vm1181 = vcmp.eq.s32.totalorder %v1019, 0
      %vm1182 = vcmp.eq.s32.totalorder %v1020, 0
      %vm1183 = vcmp.eq.s32.totalorder %v1021, 0
      %vm1184 = vcmp.eq.s32.totalorder %v1022, 0
      %vm1185 = vcmp.eq.s32.totalorder %v1023, 0
      %vm1186 = vcmp.eq.s32.totalorder %v1024, 0
      %vm1187 = vcmp.eq.s32.totalorder %v1025, 0
      %vm1188 = vcmp.eq.s32.totalorder %v1026, 0
      %vm1189 = vcmp.eq.s32.totalorder %v1027, 0
      %vm1190 = vcmp.eq.s32.totalorder %v1028, 0
      %vm1191 = vcmp.eq.s32.totalorder %v1029, 0
      %vm1192 = vcmp.eq.s32.totalorder %v1030, 0
      %vm1193 = vcmp.eq.s32.totalorder %v1031, 0
      %vm1194 = vcmp.eq.s32.totalorder %v1032, 0
      %vm1195 = vcmp.eq.s32.totalorder %v1033, 0
      %vm1196 = vcmp.eq.s32.totalorder %v1034, 0
      %vm1197 = vcmp.eq.s32.totalorder %v1035, 0
      %vm1198 = vcmp.eq.s32.totalorder %v1036, 0
      %vm1199 = vcmp.eq.s32.totalorder %v1037, 0
      %vm1200 = vcmp.eq.s32.totalorder %v1038, 0
      %vm1201 = vcmp.eq.s32.totalorder %v1039, 0
      %v1202 = vsel %vm1170, 1, 0
      %v1203 = vsel %vm1171, 1, 0
      %v1204 = vsel %vm1172, 1, 0
      %v1205 = vsel %vm1173, 1, 0
      %v1206 = vsel %vm1174, 1, 0
      %v1207 = vsel %vm1175, 1, 0
      %v1208 = vsel %vm1176, 1, 0
      %v1209 = vsel %vm1177, 1, 0
      %v1210 = vsel %vm1178, 1, 0
      %v1211 = vsel %vm1179, 1, 0
      %v1212 = vsel %vm1180, 1, 0
      %v1213 = vsel %vm1181, 1, 0
      %v1214 = vsel %vm1182, 1, 0
      %v1215 = vsel %vm1183, 1, 0
      %v1216 = vsel %vm1184, 1, 0
      %v1217 = vsel %vm1185, 1, 0
      %v1218 = vsel %vm1186, 1, 0
      %v1219 = vsel %vm1187, 1, 0
      %v1220 = vsel %vm1188, 1, 0
      %v1221 = vsel %vm1189, 1, 0
      %v1222 = vsel %vm1190, 1, 0
      %v1223 = vsel %vm1191, 1, 0
      %v1224 = vsel %vm1192, 1, 0
      %v1225 = vsel %vm1193, 1, 0
      %v1226 = vsel %vm1194, 1, 0
      %v1227 = vsel %vm1195, 1, 0
      %v1228 = vsel %vm1196, 1, 0
      %v1229 = vsel %vm1197, 1, 0
      %v1230 = vsel %vm1198, 1, 0
      %v1231 = vsel %vm1199, 1, 0
      %v1232 = vsel %vm1200, 1, 0
      %v1233 = vsel %vm1201, 1, 0
      %vm1234 = vcmp.eq.s32.totalorder %v1202, 1
      %vm1235 = vcmp.eq.s32.totalorder %v1203, 1
      %vm1236 = vcmp.eq.s32.totalorder %v1204, 1
      %vm1237 = vcmp.eq.s32.totalorder %v1205, 1
      %vm1238 = vcmp.eq.s32.totalorder %v1206, 1
      %vm1239 = vcmp.eq.s32.totalorder %v1207, 1
      %vm1240 = vcmp.eq.s32.totalorder %v1208, 1
      %vm1241 = vcmp.eq.s32.totalorder %v1209, 1
      %vm1242 = vcmp.eq.s32.totalorder %v1210, 1
      %vm1243 = vcmp.eq.s32.totalorder %v1211, 1
      %vm1244 = vcmp.eq.s32.totalorder %v1212, 1
      %vm1245 = vcmp.eq.s32.totalorder %v1213, 1
      %vm1246 = vcmp.eq.s32.totalorder %v1214, 1
      %vm1247 = vcmp.eq.s32.totalorder %v1215, 1
      %vm1248 = vcmp.eq.s32.totalorder %v1216, 1
      %vm1249 = vcmp.eq.s32.totalorder %v1217, 1
      %vm1250 = vcmp.eq.s32.totalorder %v1218, 1
      %vm1251 = vcmp.eq.s32.totalorder %v1219, 1
      %vm1252 = vcmp.eq.s32.totalorder %v1220, 1
      %vm1253 = vcmp.eq.s32.totalorder %v1221, 1
      %vm1254 = vcmp.eq.s32.totalorder %v1222, 1
      %vm1255 = vcmp.eq.s32.totalorder %v1223, 1
      %vm1256 = vcmp.eq.s32.totalorder %v1224, 1
      %vm1257 = vcmp.eq.s32.totalorder %v1225, 1
      %vm1258 = vcmp.eq.s32.totalorder %v1226, 1
      %vm1259 = vcmp.eq.s32.totalorder %v1227, 1
      %vm1260 = vcmp.eq.s32.totalorder %v1228, 1
      %vm1261 = vcmp.eq.s32.totalorder %v1229, 1
      %vm1262 = vcmp.eq.s32.totalorder %v1230, 1
      %vm1263 = vcmp.eq.s32.totalorder %v1231, 1
      %vm1264 = vcmp.eq.s32.totalorder %v1232, 1
      %vm1265 = vcmp.eq.s32.totalorder %v1233, 1
      %v1266 = vsel %vm1234, 0.0, %v1104
      %v1267 = vsel %vm1235, 0.0, %v1103
      %v1268 = vsel %vm1236, 0.0, %v1102
      %v1269 = vsel %vm1237, 0.0, %v1101
      %v1270 = vsel %vm1238, 0.0, %v1100
      %v1271 = vsel %vm1239, 0.0, %v1099
      %v1272 = vsel %vm1240, 0.0, %v1098
      %v1273 = vsel %vm1241, 0.0, %v1097
      %v1274 = vsel %vm1242, 0.0, %v1096
      %v1275 = vsel %vm1243, 0.0, %v1095
      %v1276 = vsel %vm1244, 0.0, %v1094
      %v1277 = vsel %vm1245, 0.0, %v1093
      %v1278 = vsel %vm1246, 0.0, %v1092
      %v1279 = vsel %vm1247, 0.0, %v1091
      %v1280 = vsel %vm1248, 0.0, %v1090
      %v1281 = vsel %vm1249, 0.0, %v1089
      %v1282 = vsel %vm1250, 0.0, %v1088
      %v1283 = vsel %vm1251, 0.0, %v1087
      %v1284 = vsel %vm1252, 0.0, %v1086
      %v1285 = vsel %vm1253, 0.0, %v1085
      %v1286 = vsel %vm1254, 0.0, %v1084
      %v1287 = vsel %vm1255, 0.0, %v1083
      %v1288 = vsel %vm1256, 0.0, %v1082
      %v1289 = vsel %vm1257, 0.0, %v1081
      %v1290 = vsel %vm1258, 0.0, %v1080
      %v1291 = vsel %vm1259, 0.0, %v1079
      %v1292 = vsel %vm1260, 0.0, %v1078
      %v1293 = vsel %vm1261, 0.0, %v1077
      %v1294 = vsel %vm1262, 0.0, %v1076
      %v1295 = vsel %vm1263, 0.0, %v1075
      %v1296 = vsel %vm1264, 0.0, %v1074
      %v1297 = vsel %vm1265, 0.0, %v1073
      %vm1298 = vcmp.eq.s32.totalorder %v1008, 15
      %vm1299 = vcmp.eq.s32.totalorder %v1009, 15
      %vm1300 = vcmp.eq.s32.totalorder %v1010, 15
      %vm1301 = vcmp.eq.s32.totalorder %v1011, 15
      %vm1302 = vcmp.eq.s32.totalorder %v1012, 15
      %vm1303 = vcmp.eq.s32.totalorder %v1013, 15
      %vm1304 = vcmp.eq.s32.totalorder %v1014, 15
      %vm1305 = vcmp.eq.s32.totalorder %v1015, 15
      %vm1306 = vcmp.eq.s32.totalorder %v1016, 15
      %vm1307 = vcmp.eq.s32.totalorder %v1017, 15
      %vm1308 = vcmp.eq.s32.totalorder %v1018, 15
      %vm1309 = vcmp.eq.s32.totalorder %v1019, 15
      %vm1310 = vcmp.eq.s32.totalorder %v1020, 15
      %vm1311 = vcmp.eq.s32.totalorder %v1021, 15
      %vm1312 = vcmp.eq.s32.totalorder %v1022, 15
      %vm1313 = vcmp.eq.s32.totalorder %v1023, 15
      %vm1314 = vcmp.eq.s32.totalorder %v1024, 15
      %vm1315 = vcmp.eq.s32.totalorder %v1025, 15
      %vm1316 = vcmp.eq.s32.totalorder %v1026, 15
      %vm1317 = vcmp.eq.s32.totalorder %v1027, 15
      %vm1318 = vcmp.eq.s32.totalorder %v1028, 15
      %vm1319 = vcmp.eq.s32.totalorder %v1029, 15
      %vm1320 = vcmp.eq.s32.totalorder %v1030, 15
      %vm1321 = vcmp.eq.s32.totalorder %v1031, 15
      %vm1322 = vcmp.eq.s32.totalorder %v1032, 15
      %vm1323 = vcmp.eq.s32.totalorder %v1033, 15
      %vm1324 = vcmp.eq.s32.totalorder %v1034, 15
      %vm1325 = vcmp.eq.s32.totalorder %v1035, 15
      %vm1326 = vcmp.eq.s32.totalorder %v1036, 15
      %vm1327 = vcmp.eq.s32.totalorder %v1037, 15
      %vm1328 = vcmp.eq.s32.totalorder %v1038, 15
      %vm1329 = vcmp.eq.s32.totalorder %v1039, 15
      %v1330 = vsel %vm1298, 1, 0
      %v1331 = vsel %vm1299, 1, 0
      %v1332 = vsel %vm1300, 1, 0
      %v1333 = vsel %vm1301, 1, 0
      %v1334 = vsel %vm1302, 1, 0
      %v1335 = vsel %vm1303, 1, 0
      %v1336 = vsel %vm1304, 1, 0
      %v1337 = vsel %vm1305, 1, 0
      %v1338 = vsel %vm1306, 1, 0
      %v1339 = vsel %vm1307, 1, 0
      %v1340 = vsel %vm1308, 1, 0
      %v1341 = vsel %vm1309, 1, 0
      %v1342 = vsel %vm1310, 1, 0
      %v1343 = vsel %vm1311, 1, 0
      %v1344 = vsel %vm1312, 1, 0
      %v1345 = vsel %vm1313, 1, 0
      %v1346 = vsel %vm1314, 1, 0
      %v1347 = vsel %vm1315, 1, 0
      %v1348 = vsel %vm1316, 1, 0
      %v1349 = vsel %vm1317, 1, 0
      %v1350 = vsel %vm1318, 1, 0
      %v1351 = vsel %vm1319, 1, 0
      %v1352 = vsel %vm1320, 1, 0
      %v1353 = vsel %vm1321, 1, 0
      %v1354 = vsel %vm1322, 1, 0
      %v1355 = vsel %vm1323, 1, 0
      %v1356 = vsel %vm1324, 1, 0
      %v1357 = vsel %vm1325, 1, 0
      %v1358 = vsel %vm1326, 1, 0
      %v1359 = vsel %vm1327, 1, 0
      %v1360 = vsel %vm1328, 1, 0
      %v1361 = vsel %vm1329, 1, 0
      %vm1362 = vcmp.eq.s32.totalorder %v1330, 1
      %vm1363 = vcmp.eq.s32.totalorder %v1331, 1
      %vm1364 = vcmp.eq.s32.totalorder %v1332, 1
      %vm1365 = vcmp.eq.s32.totalorder %v1333, 1
      %vm1366 = vcmp.eq.s32.totalorder %v1334, 1
      %vm1367 = vcmp.eq.s32.totalorder %v1335, 1
      %vm1368 = vcmp.eq.s32.totalorder %v1336, 1
      %vm1369 = vcmp.eq.s32.totalorder %v1337, 1
      %vm1370 = vcmp.eq.s32.totalorder %v1338, 1
      %vm1371 = vcmp.eq.s32.totalorder %v1339, 1
      %vm1372 = vcmp.eq.s32.totalorder %v1340, 1
      %vm1373 = vcmp.eq.s32.totalorder %v1341, 1
      %vm1374 = vcmp.eq.s32.totalorder %v1342, 1
      %vm1375 = vcmp.eq.s32.totalorder %v1343, 1
      %vm1376 = vcmp.eq.s32.totalorder %v1344, 1
      %vm1377 = vcmp.eq.s32.totalorder %v1345, 1
      %vm1378 = vcmp.eq.s32.totalorder %v1346, 1
      %vm1379 = vcmp.eq.s32.totalorder %v1347, 1
      %vm1380 = vcmp.eq.s32.totalorder %v1348, 1
      %vm1381 = vcmp.eq.s32.totalorder %v1349, 1
      %vm1382 = vcmp.eq.s32.totalorder %v1350, 1
      %vm1383 = vcmp.eq.s32.totalorder %v1351, 1
      %vm1384 = vcmp.eq.s32.totalorder %v1352, 1
      %vm1385 = vcmp.eq.s32.totalorder %v1353, 1
      %vm1386 = vcmp.eq.s32.totalorder %v1354, 1
      %vm1387 = vcmp.eq.s32.totalorder %v1355, 1
      %vm1388 = vcmp.eq.s32.totalorder %v1356, 1
      %vm1389 = vcmp.eq.s32.totalorder %v1357, 1
      %vm1390 = vcmp.eq.s32.totalorder %v1358, 1
      %vm1391 = vcmp.eq.s32.totalorder %v1359, 1
      %vm1392 = vcmp.eq.s32.totalorder %v1360, 1
      %vm1393 = vcmp.eq.s32.totalorder %v1361, 1
      %v1394 = vsel %vm1362, 0.0, %v1168
      %v1395 = vsel %vm1363, 0.0, %v1167
      %v1396 = vsel %vm1364, 0.0, %v1166
      %v1397 = vsel %vm1365, 0.0, %v1165
      %v1398 = vsel %vm1366, 0.0, %v1164
      %v1399 = vsel %vm1367, 0.0, %v1163
      %v1400 = vsel %vm1368, 0.0, %v1162
      %v1401 = vsel %vm1369, 0.0, %v1161
      %v1402 = vsel %vm1370, 0.0, %v1160
      %v1403 = vsel %vm1371, 0.0, %v1159
      %v1404 = vsel %vm1372, 0.0, %v1158
      %v1405 = vsel %vm1373, 0.0, %v1157
      %v1406 = vsel %vm1374, 0.0, %v1156
      %v1407 = vsel %vm1375, 0.0, %v1155
      %v1408 = vsel %vm1376, 0.0, %v1154
      %v1409 = vsel %vm1377, 0.0, %v1153
      %v1410 = vsel %vm1378, 0.0, %v1152
      %v1411 = vsel %vm1379, 0.0, %v1151
      %v1412 = vsel %vm1380, 0.0, %v1150
      %v1413 = vsel %vm1381, 0.0, %v1149
      %v1414 = vsel %vm1382, 0.0, %v1148
      %v1415 = vsel %vm1383, 0.0, %v1147
      %v1416 = vsel %vm1384, 0.0, %v1146
      %v1417 = vsel %vm1385, 0.0, %v1145
      %v1418 = vsel %vm1386, 0.0, %v1144
      %v1419 = vsel %vm1387, 0.0, %v1143
      %v1420 = vsel %vm1388, 0.0, %v1142
      %v1421 = vsel %vm1389, 0.0, %v1141
      %v1422 = vsel %vm1390, 0.0, %v1140
      %v1423 = vsel %vm1391, 0.0, %v1139
      %v1424 = vsel %vm1392, 0.0, %v1138
      %v1425 = vsel %vm1393, 0.0, %v1169
      %1458 = vrot.lane.b32.xlu0 %v1266, 8
      %v1459 = vpop.permute.xlu0 %1458
      %1460 = vrot.lane.b32.xlu0 %v1267, 8
      %v1461 = vpop.permute.xlu0 %1460
      %1462 = vrot.lane.b32.xlu0 %v1268, 8
      %v1463 = vpop.permute.xlu0 %1462
      %1464 = vrot.lane.b32.xlu0 %v1269, 8
      %v1465 = vpop.permute.xlu0 %1464
      %1466 = vrot.lane.b32.xlu0 %v1270, 8
      %v1467 = vpop.permute.xlu0 %1466
      %1468 = vrot.lane.b32.xlu0 %v1271, 8
      %v1469 = vpop.permute.xlu0 %1468
      %1470 = vrot.lane.b32.xlu0 %v1272, 8
      %v1471 = vpop.permute.xlu0 %1470
      %1472 = vrot.lane.b32.xlu0 %v1273, 8
      %v1473 = vpop.permute.xlu0 %1472
      %1474 = vrot.lane.b32.xlu0 %v1274, 8
      %v1475 = vpop.permute.xlu0 %1474
      %1476 = vrot.lane.b32.xlu0 %v1275, 8
      %v1477 = vpop.permute.xlu0 %1476
      %1478 = vrot.lane.b32.xlu0 %v1276, 8
      %v1479 = vpop.permute.xlu0 %1478
      %1480 = vrot.lane.b32.xlu0 %v1277, 8
      %v1481 = vpop.permute.xlu0 %1480
      %1482 = vrot.lane.b32.xlu0 %v1278, 8
      %v1483 = vpop.permute.xlu0 %1482
      %1484 = vrot.lane.b32.xlu0 %v1279, 8
      %v1485 = vpop.permute.xlu0 %1484
      %1486 = vrot.lane.b32.xlu0 %v1280, 8
      %v1487 = vpop.permute.xlu0 %1486
      %1488 = vrot.lane.b32.xlu0 %v1281, 8
      %v1489 = vpop.permute.xlu0 %1488
      %1490 = vrot.lane.b32.xlu0 %v1282, 8
      %v1491 = vpop.permute.xlu0 %1490
      %1492 = vrot.lane.b32.xlu0 %v1283, 8
      %v1493 = vpop.permute.xlu0 %1492
      %1494 = vrot.lane.b32.xlu0 %v1284, 8
      %v1495 = vpop.permute.xlu0 %1494
      %1496 = vrot.lane.b32.xlu0 %v1285, 8
      %v1497 = vpop.permute.xlu0 %1496
      %1498 = vrot.lane.b32.xlu0 %v1286, 8
      %v1499 = vpop.permute.xlu0 %1498
      %1500 = vrot.lane.b32.xlu0 %v1287, 8
      %v1501 = vpop.permute.xlu0 %1500
      %1502 = vrot.lane.b32.xlu0 %v1288, 8
      %v1503 = vpop.permute.xlu0 %1502
      %1504 = vrot.lane.b32.xlu0 %v1289, 8
      %v1505 = vpop.permute.xlu0 %1504
      %1506 = vrot.lane.b32.xlu0 %v1290, 8
      %v1507 = vpop.permute.xlu0 %1506
      %1508 = vrot.lane.b32.xlu0 %v1291, 8
      %v1509 = vpop.permute.xlu0 %1508
      %1510 = vrot.lane.b32.xlu0 %v1292, 8
      %v1511 = vpop.permute.xlu0 %1510
      %1512 = vrot.lane.b32.xlu0 %v1293, 8
      %v1513 = vpop.permute.xlu0 %1512
      %1514 = vrot.lane.b32.xlu0 %v1294, 8
      %v1515 = vpop.permute.xlu0 %1514
      %1516 = vrot.lane.b32.xlu0 %v1295, 8
      %v1517 = vpop.permute.xlu0 %1516
      %1518 = vrot.lane.b32.xlu0 %v1296, 8
      %v1519 = vpop.permute.xlu0 %1518
      %1520 = vrot.lane.b32.xlu0 %v1297, 8
      %v1521 = vpop.permute.xlu0 %1520
      %1586 = vrot.lane.b32.xlu0 %v1394, 16
      %v1587 = vpop.permute.xlu0 %1586
      %1588 = vrot.lane.b32.xlu0 %v1395, 16
      %v1589 = vpop.permute.xlu0 %1588
      %1590 = vrot.lane.b32.xlu0 %v1396, 16
      %v1591 = vpop.permute.xlu0 %1590
      %1592 = vrot.lane.b32.xlu0 %v1397, 16
      %v1593 = vpop.permute.xlu0 %1592
      %1594 = vrot.lane.b32.xlu0 %v1398, 16
      %v1595 = vpop.permute.xlu0 %1594
      %1596 = vrot.lane.b32.xlu0 %v1399, 16
      %v1597 = vpop.permute.xlu0 %1596
      %1598 = vrot.lane.b32.xlu0 %v1400, 16
      %v1599 = vpop.permute.xlu0 %1598
      %1600 = vrot.lane.b32.xlu0 %v1401, 16
      %v1601 = vpop.permute.xlu0 %1600
      %1602 = vrot.lane.b32.xlu0 %v1402, 16
      %v1603 = vpop.permute.xlu0 %1602
      %1604 = vrot.lane.b32.xlu0 %v1403, 16
      %v1605 = vpop.permute.xlu0 %1604
      %1606 = vrot.lane.b32.xlu0 %v1404, 16
      %v1607 = vpop.permute.xlu0 %1606
      %1608 = vrot.lane.b32.xlu0 %v1405, 16
      %v1609 = vpop.permute.xlu0 %1608
      %1610 = vrot.lane.b32.xlu0 %v1406, 16
      %v1611 = vpop.permute.xlu0 %1610
      %1612 = vrot.lane.b32.xlu0 %v1407, 16
      %v1613 = vpop.permute.xlu0 %1612
      %1614 = vrot.lane.b32.xlu0 %v1408, 16
      %v1615 = vpop.permute.xlu0 %1614
      %1616 = vrot.lane.b32.xlu0 %v1409, 16
      %v1617 = vpop.permute.xlu0 %1616
      %1618 = vrot.lane.b32.xlu0 %v1410, 16
      %v1619 = vpop.permute.xlu0 %1618
      %1620 = vrot.lane.b32.xlu0 %v1411, 16
      %v1621 = vpop.permute.xlu0 %1620
      %1622 = vrot.lane.b32.xlu0 %v1412, 16
      %v1623 = vpop.permute.xlu0 %1622
      %1624 = vrot.lane.b32.xlu0 %v1413, 16
      %v1625 = vpop.permute.xlu0 %1624
      %1626 = vrot.lane.b32.xlu0 %v1414, 16
      %v1627 = vpop.permute.xlu0 %1626
      %1628 = vrot.lane.b32.xlu0 %v1415, 16
      %v1629 = vpop.permute.xlu0 %1628
      %1630 = vrot.lane.b32.xlu0 %v1416, 16
      %v1631 = vpop.permute.xlu0 %1630
      %1632 = vrot.lane.b32.xlu0 %v1417, 16
      %v1633 = vpop.permute.xlu0 %1632
      %1634 = vrot.lane.b32.xlu0 %v1418, 16
      %v1635 = vpop.permute.xlu0 %1634
      %1636 = vrot.lane.b32.xlu0 %v1419, 16
      %v1637 = vpop.permute.xlu0 %1636
      %1638 = vrot.lane.b32.xlu0 %v1420, 16
      %v1639 = vpop.permute.xlu0 %1638
      %1640 = vrot.lane.b32.xlu0 %v1421, 16
      %v1641 = vpop.permute.xlu0 %1640
      %1642 = vrot.lane.b32.xlu0 %v1422, 16
      %v1643 = vpop.permute.xlu0 %1642
      %1644 = vrot.lane.b32.xlu0 %v1423, 16
      %v1645 = vpop.permute.xlu0 %1644
      %1646 = vrot.lane.b32.xlu0 %v1424, 16
      %v1647 = vpop.permute.xlu0 %1646
      %1648 = vrot.lane.b32.xlu0 %v1425, 16
      %v1649 = vpop.permute.xlu0 %1648
      %vm1682 = vcmask 64512
      %v1683 = vsel %vm1682, %v591, %v1459
      %v1684 = vsel %vm1682, %v592, %v1461
      %v1685 = vsel %vm1682, %v593, %v1463
      %v1686 = vsel %vm1682, %v594, %v1465
      %v1687 = vsel %vm1682, %v595, %v1467
      %v1688 = vsel %vm1682, %v596, %v1469
      %v1689 = vsel %vm1682, %v597, %v1471
      %v1690 = vsel %vm1682, %v598, %v1473
      %v1691 = vsel %vm1682, %v599, %v1475
      %v1692 = vsel %vm1682, %v600, %v1477
      %v1693 = vsel %vm1682, %v601, %v1479
      %v1694 = vsel %vm1682, %v602, %v1481
      %v1695 = vsel %vm1682, %v603, %v1483
      %v1696 = vsel %vm1682, %v604, %v1485
      %v1697 = vsel %vm1682, %v605, %v1487
      %v1698 = vsel %vm1682, %v606, %v1489
      %v1699 = vsel %vm1682, %v607, %v1491
      %v1700 = vsel %vm1682, %v608, %v1493
      %v1701 = vsel %vm1682, %v609, %v1495
      %v1702 = vsel %vm1682, %v610, %v1497
      %v1703 = vsel %vm1682, %v611, %v1499
      %v1704 = vsel %vm1682, %v612, %v1501
      %v1705 = vsel %vm1682, %v613, %v1503
      %v1706 = vsel %vm1682, %v614, %v1505
      %v1707 = vsel %vm1682, %v615, %v1507
      %v1708 = vsel %vm1682, %v616, %v1509
      %v1709 = vsel %vm1682, %v617, %v1511
      %v1710 = vsel %vm1682, %v618, %v1513
      %v1711 = vsel %vm1682, %v619, %v1515
      %v1712 = vsel %vm1682, %v620, %v1517
      %v1713 = vsel %vm1682, %v621, %v1519
      %v1714 = vsel %vm1682, %v622, %v1521
      %vm1715 = vcmask 130048
      %v1716 = vsel %vm1715, %v1683, %v1587
      %v1717 = vsel %vm1715, %v1684, %v1589
      %v1718 = vsel %vm1715, %v1685, %v1591
      %v1719 = vsel %vm1715, %v1686, %v1593
      %v1720 = vsel %vm1715, %v1687, %v1595
      %v1721 = vsel %vm1715, %v1688, %v1597
      %v1722 = vsel %vm1715, %v1689, %v1599
      %v1723 = vsel %vm1715, %v1690, %v1601
      %v1724 = vsel %vm1715, %v1691, %v1603
      %v1725 = vsel %vm1715, %v1692, %v1605
      %v1726 = vsel %vm1715, %v1693, %v1607
      %v1727 = vsel %vm1715, %v1694, %v1609
      %v1728 = vsel %vm1715, %v1695, %v1611
      %v1729 = vsel %vm1715, %v1696, %v1613
      %v1730 = vsel %vm1715, %v1697, %v1615
      %v1731 = vsel %vm1715, %v1698, %v1617
      %v1732 = vsel %vm1715, %v1699, %v1619
      %v1733 = vsel %vm1715, %v1700, %v1621
      %v1734 = vsel %vm1715, %v1701, %v1623
      %v1735 = vsel %vm1715, %v1702, %v1625
      %v1736 = vsel %vm1715, %v1703, %v1627
      %v1737 = vsel %vm1715, %v1704, %v1629
      %v1738 = vsel %vm1715, %v1705, %v1631
      %v1739 = vsel %vm1715, %v1706, %v1633
      %v1740 = vsel %vm1715, %v1707, %v1635
      %v1741 = vsel %vm1715, %v1708, %v1637
      %v1742 = vsel %vm1715, %v1709, %v1639
      %v1743 = vsel %vm1715, %v1710, %v1641
      %v1744 = vsel %vm1715, %v1711, %v1643
      %v1745 = vsel %vm1715, %v1712, %v1645
      %v1746 = vsel %vm1715, %v1713, %v1647
      %v1747 = vsel %vm1715, %v1714, %v1649
      %vm1748 = vcmask 195584
      %1749 = vst.msk [vmem:[#allocation2] sm:$0xff] %vm1748, 0.0
      %1750 = vst.msk [vmem:[#allocation2 + $0x8] sm:$0xff] %vm1748, 0.0
      %1751 = vst.msk [vmem:[#allocation2 + $0x110] sm:$0xff] %vm1748, 0.0
      %1752 = vst.msk [vmem:[#allocation2 + $0x118] sm:$0xff] %vm1748, 0.0
      %1753 = vst.msk [vmem:[#allocation2 + $0x10] sm:$0xff] %vm1748, %v1716
      %1754 = vst.msk [vmem:[#allocation2 + $0x18] sm:$0xff] %vm1748, %v1717
      %1755 = vst.msk [vmem:[#allocation2 + $0x20] sm:$0xff] %vm1748, %v1718
      %1756 = vst.msk [vmem:[#allocation2 + $0x28] sm:$0xff] %vm1748, %v1719
      %1757 = vst.msk [vmem:[#allocation2 + $0x30] sm:$0xff] %vm1748, %v1720
      %1758 = vst.msk [vmem:[#allocation2 + $0x38] sm:$0xff] %vm1748, %v1721
      %1759 = vst.msk [vmem:[#allocation2 + $0x40] sm:$0xff] %vm1748, %v1722
      %1760 = vst.msk [vmem:[#allocation2 + $0x48] sm:$0xff] %vm1748, %v1723
      %1761 = vst.msk [vmem:[#allocation2 + $0x50] sm:$0xff] %vm1748, %v1724
      %1762 = vst.msk [vmem:[#allocation2 + $0x58] sm:$0xff] %vm1748, %v1725
      %1763 = vst.msk [vmem:[#allocation2 + $0x60] sm:$0xff] %vm1748, %v1726
      %1764 = vst.msk [vmem:[#allocation2 + $0x68] sm:$0xff] %vm1748, %v1727
      %1765 = vst.msk [vmem:[#allocation2 + $0x70] sm:$0xff] %vm1748, %v1728
      %1766 = vst.msk [vmem:[#allocation2 + $0x78] sm:$0xff] %vm1748, %v1729
      %1767 = vst.msk [vmem:[#allocation2 + $0x80] sm:$0xff] %vm1748, %v1730
      %1768 = vst.msk [vmem:[#allocation2 + $0x88] sm:$0xff] %vm1748, %v1731
      %1769 = vst.msk [vmem:[#allocation2 + $0x90] sm:$0xff] %vm1748, %v1732
      %1770 = vst.msk [vmem:[#allocation2 + $0x98] sm:$0xff] %vm1748, %v1733
      %1771 = vst.msk [vmem:[#allocation2 + $0xa0] sm:$0xff] %vm1748, %v1734
      %1772 = vst.msk [vmem:[#allocation2 + $0xa8] sm:$0xff] %vm1748, %v1735
      %1773 = vst.msk [vmem:[#allocation2 + $0xb0] sm:$0xff] %vm1748, %v1736
      %1774 = vst.msk [vmem:[#allocation2 + $0xb8] sm:$0xff] %vm1748, %v1737
      %1775 = vst.msk [vmem:[#allocation2 + $0xc0] sm:$0xff] %vm1748, %v1738
      %1776 = vst.msk [vmem:[#allocation2 + $0xc8] sm:$0xff] %vm1748, %v1739
      %1777 = vst.msk [vmem:[#allocation2 + $0xd0] sm:$0xff] %vm1748, %v1740
      %1778 = vst.msk [vmem:[#allocation2 + $0xd8] sm:$0xff] %vm1748, %v1741
      %1779 = vst.msk [vmem:[#allocation2 + $0xe0] sm:$0xff] %vm1748, %v1742
      %1780 = vst.msk [vmem:[#allocation2 + $0xe8] sm:$0xff] %vm1748, %v1743
      %1781 = vst.msk [vmem:[#allocation2 + $0xf0] sm:$0xff] %vm1748, %v1744
      %1782 = vst.msk [vmem:[#allocation2 + $0xf8] sm:$0xff] %vm1748, %v1745
      %1783 = vst.msk [vmem:[#allocation2 + $0x100] sm:$0xff] %vm1748, %v1746
      %1784 = vst.msk [vmem:[#allocation2 + $0x108] sm:$0xff] %vm1748, %v1747
      %v1785 = vld [vmem:[%s3] sm:$0xff]
      %v1786 = vld [vmem:[%s3 + $0x8] sm:$0xff]
      %v1787 = vld [vmem:[%s3 + $0x10] sm:$0xff]
      %s1788 = scalar_lea.vmem %s3, 24
      %v1789 = vld [vmem:[%s1788] sm:$0xff]
      %v1790 = vld [vmem:[%s1788 + $0x8] sm:$0xff]
      %v1791 = vld [vmem:[%s1788 + $0x10] sm:$0xff]
      %s1792 = scalar_lea.vmem %s3, 48
      %v1793 = vld [vmem:[%s1792] sm:$0xff]
      %v1794 = vld [vmem:[%s1792 + $0x8] sm:$0xff]
      %v1795 = vld [vmem:[%s1792 + $0x10] sm:$0xff]
      %v1796 = vld [vmem:[%s4] sm:$0x1]
      %v1797 = vld [vmem:[#allocation2] sm:$0xff]
      %v1798 = vld [vmem:[#allocation2 + $0x8] sm:$0xff]
      %v1799 = vld [vmem:[#allocation2 + $0x10] sm:$0xff]
      %v1800 = vld [vmem:[#allocation2 + $0x18] sm:$0xff]
      %v1801 = vld [vmem:[#allocation2 + $0x20] sm:$0xff]
      %v1802 = vld [vmem:[#allocation2 + $0x28] sm:$0xff]
      %v1803 = vld [vmem:[#allocation2 + $0x30] sm:$0xff]
      %v1804 = vld [vmem:[#allocation2 + $0x38] sm:$0xff]
      %v1805 = vld [vmem:[#allocation2 + $0x40] sm:$0xff]
      %v1806 = vld [vmem:[#allocation2 + $0x48] sm:$0xff]
      %v1807 = vld [vmem:[#allocation2 + $0x50] sm:$0xff]
      %v1808 = vld [vmem:[#allocation2 + $0x58] sm:$0xff]
      %v1809 = vld [vmem:[#allocation2 + $0x60] sm:$0xff]
      %v1810 = vld [vmem:[#allocation2 + $0x68] sm:$0xff]
      %v1811 = vld [vmem:[#allocation2 + $0x70] sm:$0xff]
      %v1812 = vld [vmem:[#allocation2 + $0x78] sm:$0xff]
      %v1813 = vld [vmem:[#allocation2 + $0x80] sm:$0xff]
      %v1814 = vld [vmem:[#allocation2 + $0x88] sm:$0xff]
      %v1815 = vld [vmem:[#allocation2 + $0x90] sm:$0xff]
      %v1816 = vld [vmem:[#allocation2 + $0x98] sm:$0xff]
      %v1817 = vld [vmem:[#allocation2 + $0xa0] sm:$0xff]
      %v1818 = vld [vmem:[#allocation2 + $0xa8] sm:$0xff]
      %v1819 = vld [vmem:[#allocation2 + $0xb0] sm:$0xff]
      %v1820 = vld [vmem:[#allocation2 + $0xb8] sm:$0xff]
      %v1821 = vld [vmem:[#allocation2 + $0xc0] sm:$0xff]
      %v1822 = vld [vmem:[#allocation2 + $0xc8] sm:$0xff]
      %v1823 = vld [vmem:[#allocation2 + $0xd0] sm:$0xff]
      %v1824 = vld [vmem:[#allocation2 + $0xd8] sm:$0xff]
      %v1825 = vld [vmem:[#allocation2 + $0xe0] sm:$0xff]
      %v1826 = vld [vmem:[#allocation2 + $0xe8] sm:$0xff]
      %v1827 = vld [vmem:[#allocation2 + $0xf0] sm:$0xff]
      %v1828 = vld [vmem:[#allocation2 + $0xf8] sm:$0xff]
      %v1829 = vld [vmem:[#allocation2 + $0x100] sm:$0xff]
      %v1830 = vld [vmem:[#allocation2 + $0x108] sm:$0xff]
      %v1831 = vld [vmem:[#allocation2 + $0x110] sm:$0xff]
      %v1832 = vld [vmem:[#allocation2 + $0x118] sm:$0xff]
      %v1834 = vsel %vm1748, %v1797, 0
      %v1837 = vsel %vm1748, %v1798, 0
      %v1840 = vsel %vm1748, %v1799, 0
      %v1843 = vsel %vm1748, %v1800, 0
      %v1846 = vsel %vm1748, %v1801, 0
      %v1849 = vsel %vm1748, %v1802, 0
      %v1852 = vsel %vm1748, %v1803, 0
      %v1855 = vsel %vm1748, %v1804, 0
      %v1858 = vsel %vm1748, %v1805, 0
      %v1861 = vsel %vm1748, %v1806, 0
      %v1864 = vsel %vm1748, %v1807, 0
      %v1867 = vsel %vm1748, %v1808, 0
      %v1870 = vsel %vm1748, %v1809, 0
      %v1873 = vsel %vm1748, %v1810, 0
      %v1876 = vsel %vm1748, %v1811, 0
      %v1879 = vsel %vm1748, %v1812, 0
      %v1882 = vsel %vm1748, %v1813, 0
      %v1885 = vsel %vm1748, %v1814, 0
      %v1888 = vsel %vm1748, %v1815, 0
      %v1891 = vsel %vm1748, %v1816, 0
      %v1894 = vsel %vm1748, %v1817, 0
      %v1897 = vsel %vm1748, %v1818, 0
      %v1900 = vsel %vm1748, %v1819, 0
      %v1903 = vsel %vm1748, %v1820, 0
      %v1906 = vsel %vm1748, %v1821, 0
      %v1909 = vsel %vm1748, %v1822, 0
      %v1912 = vsel %vm1748, %v1823, 0
      %v1915 = vsel %vm1748, %v1824, 0
      %v1918 = vsel %vm1748, %v1825, 0
      %v1921 = vsel %vm1748, %v1826, 0
      %v1924 = vsel %vm1748, %v1827, 0
      %v1927 = vsel %vm1748, %v1828, 0
      %1929 = vmatprep.subr.mxu0 0.0
      %1930 = vmatpush1.msra.mxu0 0.0
      %1931 = vmatprep.subr.mxu0 0.0
      %1932 = vmatpush1.msra.mxu0 0.0
      %1933 = vmatprep.subr.mxu0 0.0
      %1934 = vmatpush1.msra.mxu0 0.0
      %1935 = vmatprep.subr.mxu0 0.0
      %1936 = vmatpush1.msra.mxu0 0.0
      %1937 = vmatprep.subr.mxu0 0.0
      %1938 = vmatpush1.msra.mxu0 0.0
      %1939 = vmatprep.subr.mxu0 0.0
      %1940 = vmatpush1.msra.mxu0 0.0
      %1941 = vmatprep.subr.mxu0 0.0
      %1942 = vmatpush1.msra.mxu0 0.0
      %1943 = vmatprep.subr.mxu0 0.0
      %1944 = vmatpush1.msra.mxu0 0.0
      %1945 = vmatprep.subr.mxu0 0.0
      %1946 = vmatpush1.msra.mxu0 0.0
      %1947 = vmatprep.subr.mxu0 0.0
      %1948 = vmatpush1.msra.mxu0 0.0
      %1949 = vmatprep.subr.mxu0 0.0
      %1950 = vmatpush1.msra.mxu0 0.0
      %1951 = vmatprep.subr.mxu0 0.0
      %1952 = vmatpush1.msra.mxu0 0.0
      %1953 = vmatprep.subr.mxu0 0.0
      %1954 = vmatpush1.msra.mxu0 0.0
      %1955 = vmatprep.subr.mxu0 0.0
      %1956 = vmatpush1.msra.mxu0 %v1787
      %1957 = vmatprep.subr.mxu0 0.0
      %1958 = vmatpush1.msra.mxu0 %v1786
      %1959 = vmatprep.subr.mxu0 0.0
      %1960 = vmatpush1.msra.mxu0 %v1785
      %1961 = vmatprep.subr.mxu0 0.0
      %1962 = vmatpush2.msra.mxu0 0.0
      %1963 = vmatprep.subr.mxu0 0.0
      %1964 = vmatpush2.msra.mxu0 0.0
      %1965 = vmatprep.subr.mxu0 0.0
      %1966 = vmatpush2.msra.mxu0 0.0
      %1967 = vmatprep.subr.mxu0 0.0
      %1968 = vmatpush2.msra.mxu0 0.0
      %1969 = vmatprep.subr.mxu0 0.0
      %1970 = vmatpush2.msra.mxu0 0.0
      %1971 = vmatprep.subr.mxu0 0.0
      %1972 = vmatpush2.msra.mxu0 0.0
      %1973 = vmatprep.subr.mxu0 0.0
      %1974 = vmatpush2.msra.mxu0 0.0
      %1975 = vmatprep.subr.mxu0 0.0
      %1976 = vmatpush2.msra.mxu0 0.0
      %1977 = vmatprep.subr.mxu0 0.0
      %1978 = vmatpush2.msra.mxu0 0.0
      %1979 = vmatprep.subr.mxu0 0.0
      %1980 = vmatpush2.msra.mxu0 0.0
      %1981 = vmatprep.subr.mxu0 0.0
      %1982 = vmatpush2.msra.mxu0 0.0
      %1983 = vmatprep.subr.mxu0 0.0
      %1984 = vmatpush2.msra.mxu0 0.0
      %1985 = vmatprep.subr.mxu0 0.0
      %1986 = vmatpush2.msra.mxu0 0.0
      %1987 = vmatprep.subr.mxu0 0.0
      %1988 = vmatpush2.msra.mxu0 0.0
      %1989 = vmatprep.subr.mxu0 0.0
      %1990 = vmatpush2.msra.mxu0 0.0
      %1991 = vmatprep.subr.mxu0 0.0
      %1992 = vmatpush2.msra.mxu0 0.0
      %1993 = vmatprep.mubr.f32.mxu0 0.0
      %1994 = vmatmul.mubr.f32.gmra.mxu0 %v1834
      %v1995 = vpop.f32.mrf.mxu0
      %v1996 = vadd.f32 0.0, %v1995
      %v1997 = vpop.f32.mrf.mxu0
      %1998 = vmatprep.mubr.f32.mxu0 0.0
      %1999 = vmatmul.mubr.f32.gmra.mxu0 %v1837
      %v2000 = vpop.f32.mrf.mxu0
      %v2001 = vadd.f32 0.0, %v2000
      %v2002 = vpop.f32.mrf.mxu0
      %2003 = vmatprep.mubr.f32.mxu0 0.0
      %2004 = vmatmul.mubr.f32.gmra.mxu0 %v1840
      %v2005 = vpop.f32.mrf.mxu0
      %v2006 = vadd.f32 0.0, %v2005
      %v2007 = vpop.f32.mrf.mxu0
      %2008 = vmatprep.mubr.f32.mxu0 0.0
      %2009 = vmatmul.mubr.f32.gmra.mxu0 %v1843
      %v2010 = vpop.f32.mrf.mxu0
      %v2011 = vadd.f32 0.0, %v2010
      %v2012 = vpop.f32.mrf.mxu0
      %2013 = vmatprep.mubr.f32.mxu0 0.0
      %2014 = vmatmul.mubr.f32.gmra.mxu0 %v1846
      %v2015 = vpop.f32.mrf.mxu0
      %v2016 = vadd.f32 0.0, %v2015
      %v2017 = vpop.f32.mrf.mxu0
      %2018 = vmatprep.mubr.f32.mxu0 0.0
      %2019 = vmatmul.mubr.f32.gmra.mxu0 %v1849
      %v2020 = vpop.f32.mrf.mxu0
      %v2021 = vadd.f32 0.0, %v2020
      %v2022 = vpop.f32.mrf.mxu0
      %2023 = vmatprep.mubr.f32.mxu0 0.0
      %2024 = vmatmul.mubr.f32.gmra.mxu0 %v1852
      %v2025 = vpop.f32.mrf.mxu0
      %v2026 = vadd.f32 0.0, %v2025
      %v2027 = vpop.f32.mrf.mxu0
      %2028 = vmatprep.mubr.f32.mxu0 0.0
      %2029 = vmatmul.mubr.f32.gmra.mxu0 %v1855
      %v2030 = vpop.f32.mrf.mxu0
      %v2031 = vadd.f32 0.0, %v2030
      %v2032 = vpop.f32.mrf.mxu0
      %2033 = vmatprep.mubr.f32.mxu0 0.0
      %2034 = vmatmul.mubr.f32.gmra.mxu0 %v1858
      %v2035 = vpop.f32.mrf.mxu0
      %v2036 = vadd.f32 0.0, %v2035
      %v2037 = vpop.f32.mrf.mxu0
      %2038 = vmatprep.mubr.f32.mxu0 0.0
      %2039 = vmatmul.mubr.f32.gmra.mxu0 %v1861
      %v2040 = vpop.f32.mrf.mxu0
      %v2041 = vadd.f32 0.0, %v2040
      %v2042 = vpop.f32.mrf.mxu0
      %2043 = vmatprep.mubr.f32.mxu0 0.0
      %2044 = vmatmul.mubr.f32.gmra.mxu0 %v1864
      %v2045 = vpop.f32.mrf.mxu0
      %v2046 = vadd.f32 0.0, %v2045
      %v2047 = vpop.f32.mrf.mxu0
      %2048 = vmatprep.mubr.f32.mxu0 0.0
      %2049 = vmatmul.mubr.f32.gmra.mxu0 %v1867
      %v2050 = vpop.f32.mrf.mxu0
      %v2051 = vadd.f32 0.0, %v2050
      %v2052 = vpop.f32.mrf.mxu0
      %2053 = vmatprep.mubr.f32.mxu0 0.0
      %2054 = vmatmul.mubr.f32.gmra.mxu0 %v1870
      %v2055 = vpop.f32.mrf.mxu0
      %v2056 = vadd.f32 0.0, %v2055
      %v2057 = vpop.f32.mrf.mxu0
      %2058 = vmatprep.mubr.f32.mxu0 0.0
      %2059 = vmatmul.mubr.f32.gmra.mxu0 %v1873
      %v2060 = vpop.f32.mrf.mxu0
      %v2061 = vadd.f32 0.0, %v2060
      %v2062 = vpop.f32.mrf.mxu0
      %2063 = vmatprep.mubr.f32.mxu0 0.0
      %2064 = vmatmul.mubr.f32.gmra.mxu0 %v1876
      %v2065 = vpop.f32.mrf.mxu0
      %v2066 = vadd.f32 0.0, %v2065
      %v2067 = vpop.f32.mrf.mxu0
      %2068 = vmatprep.mubr.f32.mxu0 0.0
      %2069 = vmatmul.mubr.f32.gmra.mxu0 %v1879
      %v2070 = vpop.f32.mrf.mxu0
      %v2071 = vadd.f32 0.0, %v2070
      %v2072 = vpop.f32.mrf.mxu0
      %2073 = vmatprep.mubr.f32.mxu0 0.0
      %2074 = vmatmul.mubr.f32.gmra.mxu0 %v1882
      %v2075 = vpop.f32.mrf.mxu0
      %v2076 = vadd.f32 0.0, %v2075
      %v2077 = vpop.f32.mrf.mxu0
      %2078 = vmatprep.mubr.f32.mxu0 0.0
      %2079 = vmatmul.mubr.f32.gmra.mxu0 %v1885
      %v2080 = vpop.f32.mrf.mxu0
      %v2081 = vadd.f32 0.0, %v2080
      %v2082 = vpop.f32.mrf.mxu0
      %2083 = vmatprep.mubr.f32.mxu0 0.0
      %2084 = vmatmul.mubr.f32.gmra.mxu0 %v1888
      %v2085 = vpop.f32.mrf.mxu0
      %v2086 = vadd.f32 0.0, %v2085
      %v2087 = vpop.f32.mrf.mxu0
      %2088 = vmatprep.mubr.f32.mxu0 0.0
      %2089 = vmatmul.mubr.f32.gmra.mxu0 %v1891
      %v2090 = vpop.f32.mrf.mxu0
      %v2091 = vadd.f32 0.0, %v2090
      %v2092 = vpop.f32.mrf.mxu0
      %2093 = vmatprep.mubr.f32.mxu0 0.0
      %2094 = vmatmul.mubr.f32.gmra.mxu0 %v1894
      %v2095 = vpop.f32.mrf.mxu0
      %v2096 = vadd.f32 0.0, %v2095
      %v2097 = vpop.f32.mrf.mxu0
      %2098 = vmatprep.mubr.f32.mxu0 0.0
      %2099 = vmatmul.mubr.f32.gmra.mxu0 %v1897
      %v2100 = vpop.f32.mrf.mxu0
      %v2101 = vadd.f32 0.0, %v2100
      %v2102 = vpop.f32.mrf.mxu0
      %2103 = vmatprep.mubr.f32.mxu0 0.0
      %2104 = vmatmul.mubr.f32.gmra.mxu0 %v1900
      %v2105 = vpop.f32.mrf.mxu0
      %v2106 = vadd.f32 0.0, %v2105
      %v2107 = vpop.f32.mrf.mxu0
      %2108 = vmatprep.mubr.f32.mxu0 0.0
      %2109 = vmatmul.mubr.f32.gmra.mxu0 %v1903
      %v2110 = vpop.f32.mrf.mxu0
      %v2111 = vadd.f32 0.0, %v2110
      %v2112 = vpop.f32.mrf.mxu0
      %2113 = vmatprep.mubr.f32.mxu0 0.0
      %2114 = vmatmul.mubr.f32.gmra.mxu0 %v1906
      %v2115 = vpop.f32.mrf.mxu0
      %v2116 = vadd.f32 0.0, %v2115
      %v2117 = vpop.f32.mrf.mxu0
      %2118 = vmatprep.mubr.f32.mxu0 0.0
      %2119 = vmatmul.mubr.f32.gmra.mxu0 %v1909
      %v2120 = vpop.f32.mrf.mxu0
      %v2121 = vadd.f32 0.0, %v2120
      %v2122 = vpop.f32.mrf.mxu0
      %2123 = vmatprep.mubr.f32.mxu0 0.0
      %2124 = vmatmul.mubr.f32.gmra.mxu0 %v1912
      %v2125 = vpop.f32.mrf.mxu0
      %v2126 = vadd.f32 0.0, %v2125
      %v2127 = vpop.f32.mrf.mxu0
      %2128 = vmatprep.mubr.f32.mxu0 0.0
      %2129 = vmatmul.mubr.f32.gmra.mxu0 %v1915
      %v2130 = vpop.f32.mrf.mxu0
      %v2131 = vadd.f32 0.0, %v2130
      %v2132 = vpop.f32.mrf.mxu0
      %2133 = vmatprep.mubr.f32.mxu0 0.0
      %2134 = vmatmul.mubr.f32.gmra.mxu0 %v1918
      %v2135 = vpop.f32.mrf.mxu0
      %v2136 = vadd.f32 0.0, %v2135
      %v2137 = vpop.f32.mrf.mxu0
      %2138 = vmatprep.mubr.f32.mxu0 0.0
      %2139 = vmatmul.mubr.f32.gmra.mxu0 %v1921
      %v2140 = vpop.f32.mrf.mxu0
      %v2141 = vadd.f32 0.0, %v2140
      %v2142 = vpop.f32.mrf.mxu0
      %2143 = vmatprep.mubr.f32.mxu0 0.0
      %2144 = vmatmul.mubr.f32.gmra.mxu0 %v1924
      %v2145 = vpop.f32.mrf.mxu0
      %v2146 = vadd.f32 0.0, %v2145
      %v2147 = vpop.f32.mrf.mxu0
      %2148 = vmatprep.mubr.f32.mxu0 0.0
      %2149 = vmatmul.mubr.f32.gmra.mxu0 %v1927
      %v2150 = vpop.f32.mrf.mxu0
      %v2151 = vadd.f32 0.0, %v2150
      %v2152 = vpop.f32.mrf.mxu0
      %2153 = vdwg.mxu0
      %v2155 = vsel %vm1748, %v1829, 0
      %v2158 = vsel %vm1748, %v1830, 0
      %2160 = vmatprep.subr.mxu0 0.0
      %2161 = vmatpush1.msra.mxu0 0.0
      %2162 = vmatprep.subr.mxu0 0.0
      %2163 = vmatpush1.msra.mxu0 0.0
      %2164 = vmatprep.subr.mxu0 0.0
      %2165 = vmatpush1.msra.mxu0 0.0
      %2166 = vmatprep.subr.mxu0 0.0
      %2167 = vmatpush1.msra.mxu0 0.0
      %2168 = vmatprep.subr.mxu0 0.0
      %2169 = vmatpush1.msra.mxu0 0.0
      %2170 = vmatprep.subr.mxu0 0.0
      %2171 = vmatpush1.msra.mxu0 0.0
      %2172 = vmatprep.subr.mxu0 0.0
      %2173 = vmatpush1.msra.mxu0 0.0
      %2174 = vmatprep.subr.mxu0 0.0
      %2175 = vmatpush1.msra.mxu0 0.0
      %2176 = vmatprep.subr.mxu0 0.0
      %2177 = vmatpush1.msra.mxu0 0.0
      %2178 = vmatprep.subr.mxu0 0.0
      %2179 = vmatpush1.msra.mxu0 0.0
      %2180 = vmatprep.subr.mxu0 0.0
      %2181 = vmatpush1.msra.mxu0 0.0
      %2182 = vmatprep.subr.mxu0 0.0
      %2183 = vmatpush1.msra.mxu0 0.0
      %2184 = vmatprep.subr.mxu0 0.0
      %2185 = vmatpush1.msra.mxu0 0.0
      %2186 = vmatprep.subr.mxu0 0.0
      %2187 = vmatpush1.msra.mxu0 %v1791
      %2188 = vmatprep.subr.mxu0 0.0
      %2189 = vmatpush1.msra.mxu0 %v1790
      %2190 = vmatprep.subr.mxu0 0.0
      %2191 = vmatpush1.msra.mxu0 %v1789
      %2192 = vmatprep.subr.mxu0 0.0
      %2193 = vmatpush2.msra.mxu0 0.0
      %2194 = vmatprep.subr.mxu0 0.0
      %2195 = vmatpush2.msra.mxu0 0.0
      %2196 = vmatprep.subr.mxu0 0.0
      %2197 = vmatpush2.msra.mxu0 0.0
      %2198 = vmatprep.subr.mxu0 0.0
      %2199 = vmatpush2.msra.mxu0 0.0
      %2200 = vmatprep.subr.mxu0 0.0
      %2201 = vmatpush2.msra.mxu0 0.0
      %2202 = vmatprep.subr.mxu0 0.0
      %2203 = vmatpush2.msra.mxu0 0.0
      %2204 = vmatprep.subr.mxu0 0.0
      %2205 = vmatpush2.msra.mxu0 0.0
      %2206 = vmatprep.subr.mxu0 0.0
      %2207 = vmatpush2.msra.mxu0 0.0
      %2208 = vmatprep.subr.mxu0 0.0
      %2209 = vmatpush2.msra.mxu0 0.0
      %2210 = vmatprep.subr.mxu0 0.0
      %2211 = vmatpush2.msra.mxu0 0.0
      %2212 = vmatprep.subr.mxu0 0.0
      %2213 = vmatpush2.msra.mxu0 0.0
      %2214 = vmatprep.subr.mxu0 0.0
      %2215 = vmatpush2.msra.mxu0 0.0
      %2216 = vmatprep.subr.mxu0 0.0
      %2217 = vmatpush2.msra.mxu0 0.0
      %2218 = vmatprep.subr.mxu0 0.0
      %2219 = vmatpush2.msra.mxu0 0.0
      %2220 = vmatprep.subr.mxu0 0.0
      %2221 = vmatpush2.msra.mxu0 0.0
      %2222 = vmatprep.subr.mxu0 0.0
      %2223 = vmatpush2.msra.mxu0 0.0
      %2224 = vmatprep.mubr.f32.mxu0 0.0
      %2225 = vmatmul.mubr.f32.gmra.mxu0 %v1840
      %v2226 = vpop.f32.mrf.mxu0
      %v2227 = vadd.f32 %v1996, %v2226
      %v2228 = vpop.f32.mrf.mxu0
      %2229 = vmatprep.mubr.f32.mxu0 0.0
      %2230 = vmatmul.mubr.f32.gmra.mxu0 %v1843
      %v2231 = vpop.f32.mrf.mxu0
      %v2232 = vadd.f32 %v2001, %v2231
      %v2233 = vpop.f32.mrf.mxu0
      %2234 = vmatprep.mubr.f32.mxu0 0.0
      %2235 = vmatmul.mubr.f32.gmra.mxu0 %v1846
      %v2236 = vpop.f32.mrf.mxu0
      %v2237 = vadd.f32 %v2006, %v2236
      %v2238 = vpop.f32.mrf.mxu0
      %2239 = vmatprep.mubr.f32.mxu0 0.0
      %2240 = vmatmul.mubr.f32.gmra.mxu0 %v1849
      %v2241 = vpop.f32.mrf.mxu0
      %v2242 = vadd.f32 %v2011, %v2241
      %v2243 = vpop.f32.mrf.mxu0
      %2244 = vmatprep.mubr.f32.mxu0 0.0
      %2245 = vmatmul.mubr.f32.gmra.mxu0 %v1852
      %v2246 = vpop.f32.mrf.mxu0
      %v2247 = vadd.f32 %v2016, %v2246
      %v2248 = vpop.f32.mrf.mxu0
      %2249 = vmatprep.mubr.f32.mxu0 0.0
      %2250 = vmatmul.mubr.f32.gmra.mxu0 %v1855
      %v2251 = vpop.f32.mrf.mxu0
      %v2252 = vadd.f32 %v2021, %v2251
      %v2253 = vpop.f32.mrf.mxu0
      %2254 = vmatprep.mubr.f32.mxu0 0.0
      %2255 = vmatmul.mubr.f32.gmra.mxu0 %v1858
      %v2256 = vpop.f32.mrf.mxu0
      %v2257 = vadd.f32 %v2026, %v2256
      %v2258 = vpop.f32.mrf.mxu0
      %2259 = vmatprep.mubr.f32.mxu0 0.0
      %2260 = vmatmul.mubr.f32.gmra.mxu0 %v1861
      %v2261 = vpop.f32.mrf.mxu0
      %v2262 = vadd.f32 %v2031, %v2261
      %v2263 = vpop.f32.mrf.mxu0
      %2264 = vmatprep.mubr.f32.mxu0 0.0
      %2265 = vmatmul.mubr.f32.gmra.mxu0 %v1864
      %v2266 = vpop.f32.mrf.mxu0
      %v2267 = vadd.f32 %v2036, %v2266
      %v2268 = vpop.f32.mrf.mxu0
      %2269 = vmatprep.mubr.f32.mxu0 0.0
      %2270 = vmatmul.mubr.f32.gmra.mxu0 %v1867
      %v2271 = vpop.f32.mrf.mxu0
      %v2272 = vadd.f32 %v2041, %v2271
      %v2273 = vpop.f32.mrf.mxu0
      %2274 = vmatprep.mubr.f32.mxu0 0.0
      %2275 = vmatmul.mubr.f32.gmra.mxu0 %v1870
      %v2276 = vpop.f32.mrf.mxu0
      %v2277 = vadd.f32 %v2046, %v2276
      %v2278 = vpop.f32.mrf.mxu0
      %2279 = vmatprep.mubr.f32.mxu0 0.0
      %2280 = vmatmul.mubr.f32.gmra.mxu0 %v1873
      %v2281 = vpop.f32.mrf.mxu0
      %v2282 = vadd.f32 %v2051, %v2281
      %v2283 = vpop.f32.mrf.mxu0
      %2284 = vmatprep.mubr.f32.mxu0 0.0
      %2285 = vmatmul.mubr.f32.gmra.mxu0 %v1876
      %v2286 = vpop.f32.mrf.mxu0
      %v2287 = vadd.f32 %v2056, %v2286
      %v2288 = vpop.f32.mrf.mxu0
      %2289 = vmatprep.mubr.f32.mxu0 0.0
      %2290 = vmatmul.mubr.f32.gmra.mxu0 %v1879
      %v2291 = vpop.f32.mrf.mxu0
      %v2292 = vadd.f32 %v2061, %v2291
      %v2293 = vpop.f32.mrf.mxu0
      %2294 = vmatprep.mubr.f32.mxu0 0.0
      %2295 = vmatmul.mubr.f32.gmra.mxu0 %v1882
      %v2296 = vpop.f32.mrf.mxu0
      %v2297 = vadd.f32 %v2066, %v2296
      %v2298 = vpop.f32.mrf.mxu0
      %2299 = vmatprep.mubr.f32.mxu0 0.0
      %2300 = vmatmul.mubr.f32.gmra.mxu0 %v1885
      %v2301 = vpop.f32.mrf.mxu0
      %v2302 = vadd.f32 %v2071, %v2301
      %v2303 = vpop.f32.mrf.mxu0
      %2304 = vmatprep.mubr.f32.mxu0 0.0
      %2305 = vmatmul.mubr.f32.gmra.mxu0 %v1888
      %v2306 = vpop.f32.mrf.mxu0
      %v2307 = vadd.f32 %v2076, %v2306
      %v2308 = vpop.f32.mrf.mxu0
      %2309 = vmatprep.mubr.f32.mxu0 0.0
      %2310 = vmatmul.mubr.f32.gmra.mxu0 %v1891
      %v2311 = vpop.f32.mrf.mxu0
      %v2312 = vadd.f32 %v2081, %v2311
      %v2313 = vpop.f32.mrf.mxu0
      %2314 = vmatprep.mubr.f32.mxu0 0.0
      %2315 = vmatmul.mubr.f32.gmra.mxu0 %v1894
      %v2316 = vpop.f32.mrf.mxu0
      %v2317 = vadd.f32 %v2086, %v2316
      %v2318 = vpop.f32.mrf.mxu0
      %2319 = vmatprep.mubr.f32.mxu0 0.0
      %2320 = vmatmul.mubr.f32.gmra.mxu0 %v1897
      %v2321 = vpop.f32.mrf.mxu0
      %v2322 = vadd.f32 %v2091, %v2321
      %v2323 = vpop.f32.mrf.mxu0
      %2324 = vmatprep.mubr.f32.mxu0 0.0
      %2325 = vmatmul.mubr.f32.gmra.mxu0 %v1900
      %v2326 = vpop.f32.mrf.mxu0
      %v2327 = vadd.f32 %v2096, %v2326
      %v2328 = vpop.f32.mrf.mxu0
      %2329 = vmatprep.mubr.f32.mxu0 0.0
      %2330 = vmatmul.mubr.f32.gmra.mxu0 %v1903
      %v2331 = vpop.f32.mrf.mxu0
      %v2332 = vadd.f32 %v2101, %v2331
      %v2333 = vpop.f32.mrf.mxu0
      %2334 = vmatprep.mubr.f32.mxu0 0.0
      %2335 = vmatmul.mubr.f32.gmra.mxu0 %v1906
      %v2336 = vpop.f32.mrf.mxu0
      %v2337 = vadd.f32 %v2106, %v2336
      %v2338 = vpop.f32.mrf.mxu0
      %2339 = vmatprep.mubr.f32.mxu0 0.0
      %2340 = vmatmul.mubr.f32.gmra.mxu0 %v1909
      %v2341 = vpop.f32.mrf.mxu0
      %v2342 = vadd.f32 %v2111, %v2341
      %v2343 = vpop.f32.mrf.mxu0
      %2344 = vmatprep.mubr.f32.mxu0 0.0
      %2345 = vmatmul.mubr.f32.gmra.mxu0 %v1912
      %v2346 = vpop.f32.mrf.mxu0
      %v2347 = vadd.f32 %v2116, %v2346
      %v2348 = vpop.f32.mrf.mxu0
      %2349 = vmatprep.mubr.f32.mxu0 0.0
      %2350 = vmatmul.mubr.f32.gmra.mxu0 %v1915
      %v2351 = vpop.f32.mrf.mxu0
      %v2352 = vadd.f32 %v2121, %v2351
      %v2353 = vpop.f32.mrf.mxu0
      %2354 = vmatprep.mubr.f32.mxu0 0.0
      %2355 = vmatmul.mubr.f32.gmra.mxu0 %v1918
      %v2356 = vpop.f32.mrf.mxu0
      %v2357 = vadd.f32 %v2126, %v2356
      %v2358 = vpop.f32.mrf.mxu0
      %2359 = vmatprep.mubr.f32.mxu0 0.0
      %2360 = vmatmul.mubr.f32.gmra.mxu0 %v1921
      %v2361 = vpop.f32.mrf.mxu0
      %v2362 = vadd.f32 %v2131, %v2361
      %v2363 = vpop.f32.mrf.mxu0
      %2364 = vmatprep.mubr.f32.mxu0 0.0
      %2365 = vmatmul.mubr.f32.gmra.mxu0 %v1924
      %v2366 = vpop.f32.mrf.mxu0
      %v2367 = vadd.f32 %v2136, %v2366
      %v2368 = vpop.f32.mrf.mxu0
      %2369 = vmatprep.mubr.f32.mxu0 0.0
      %2370 = vmatmul.mubr.f32.gmra.mxu0 %v1927
      %v2371 = vpop.f32.mrf.mxu0
      %v2372 = vadd.f32 %v2141, %v2371
      %v2373 = vpop.f32.mrf.mxu0
      %2374 = vmatprep.mubr.f32.mxu0 0.0
      %2375 = vmatmul.mubr.f32.gmra.mxu0 %v2155
      %v2376 = vpop.f32.mrf.mxu0
      %v2377 = vadd.f32 %v2146, %v2376
      %v2378 = vpop.f32.mrf.mxu0
      %2379 = vmatprep.mubr.f32.mxu0 0.0
      %2380 = vmatmul.mubr.f32.gmra.mxu0 %v2158
      %v2381 = vpop.f32.mrf.mxu0
      %v2382 = vadd.f32 %v2151, %v2381
      %v2383 = vpop.f32.mrf.mxu0
      %2384 = vdwg.mxu0
      %v2386 = vsel %vm1748, %v1831, 0
      %v2389 = vsel %vm1748, %v1832, 0
      %2391 = vmatprep.subr.mxu0 0.0
      %2392 = vmatpush1.msra.mxu0 0.0
      %2393 = vmatprep.subr.mxu0 0.0
      %2394 = vmatpush1.msra.mxu0 0.0
      %2395 = vmatprep.subr.mxu0 0.0
      %2396 = vmatpush1.msra.mxu0 0.0
      %2397 = vmatprep.subr.mxu0 0.0
      %2398 = vmatpush1.msra.mxu0 0.0
      %2399 = vmatprep.subr.mxu0 0.0
      %2400 = vmatpush1.msra.mxu0 0.0
      %2401 = vmatprep.subr.mxu0 0.0
      %2402 = vmatpush1.msra.mxu0 0.0
      %2403 = vmatprep.subr.mxu0 0.0
      %2404 = vmatpush1.msra.mxu0 0.0
      %2405 = vmatprep.subr.mxu0 0.0
      %2406 = vmatpush1.msra.mxu0 0.0
      %2407 = vmatprep.subr.mxu0 0.0
      %2408 = vmatpush1.msra.mxu0 0.0
      %2409 = vmatprep.subr.mxu0 0.0
      %2410 = vmatpush1.msra.mxu0 0.0
      %2411 = vmatprep.subr.mxu0 0.0
      %2412 = vmatpush1.msra.mxu0 0.0
      %2413 = vmatprep.subr.mxu0 0.0
      %2414 = vmatpush1.msra.mxu0 0.0
      %2415 = vmatprep.subr.mxu0 0.0
      %2416 = vmatpush1.msra.mxu0 0.0
      %2417 = vmatprep.subr.mxu0 0.0
      %2418 = vmatpush1.msra.mxu0 %v1795
      %2419 = vmatprep.subr.mxu0 0.0
      %2420 = vmatpush1.msra.mxu0 %v1794
      %2421 = vmatprep.subr.mxu0 0.0
      %2422 = vmatpush1.msra.mxu0 %v1793
      %2423 = vmatprep.subr.mxu0 0.0
      %2424 = vmatpush2.msra.mxu0 0.0
      %2425 = vmatprep.subr.mxu0 0.0
      %2426 = vmatpush2.msra.mxu0 0.0
      %2427 = vmatprep.subr.mxu0 0.0
      %2428 = vmatpush2.msra.mxu0 0.0
      %2429 = vmatprep.subr.mxu0 0.0
      %2430 = vmatpush2.msra.mxu0 0.0
      %2431 = vmatprep.subr.mxu0 0.0
      %2432 = vmatpush2.msra.mxu0 0.0
      %2433 = vmatprep.subr.mxu0 0.0
      %2434 = vmatpush2.msra.mxu0 0.0
      %2435 = vmatprep.subr.mxu0 0.0
      %2436 = vmatpush2.msra.mxu0 0.0
      %2437 = vmatprep.subr.mxu0 0.0
      %2438 = vmatpush2.msra.mxu0 0.0
      %2439 = vmatprep.subr.mxu0 0.0
      %2440 = vmatpush2.msra.mxu0 0.0
      %2441 = vmatprep.subr.mxu0 0.0
      %2442 = vmatpush2.msra.mxu0 0.0
      %2443 = vmatprep.subr.mxu0 0.0
      %2444 = vmatpush2.msra.mxu0 0.0
      %2445 = vmatprep.subr.mxu0 0.0
      %2446 = vmatpush2.msra.mxu0 0.0
      %2447 = vmatprep.subr.mxu0 0.0
      %2448 = vmatpush2.msra.mxu0 0.0
      %2449 = vmatprep.subr.mxu0 0.0
      %2450 = vmatpush2.msra.mxu0 0.0
      %2451 = vmatprep.subr.mxu0 0.0
      %2452 = vmatpush2.msra.mxu0 0.0
      %2453 = vmatprep.subr.mxu0 0.0
      %2454 = vmatpush2.msra.mxu0 0.0
      %2455 = vmatprep.mubr.f32.mxu0 0.0
      %2456 = vmatmul.mubr.f32.gmra.mxu0 %v1846
      %v2457 = vpop.f32.mrf.mxu0
      %v2458 = vadd.f32 0.0, %v2457
      %v2459 = vpop.f32.mrf.mxu0
      %2460 = vmatprep.mubr.f32.mxu0 0.0
      %2461 = vmatmul.mubr.f32.gmra.mxu0 %v1849
      %v2462 = vpop.f32.mrf.mxu0
      %v2463 = vadd.f32 0.0, %v2462
      %v2464 = vpop.f32.mrf.mxu0
      %2465 = vmatprep.mubr.f32.mxu0 0.0
      %2466 = vmatmul.mubr.f32.gmra.mxu0 %v1852
      %v2467 = vpop.f32.mrf.mxu0
      %v2468 = vadd.f32 0.0, %v2467
      %v2469 = vpop.f32.mrf.mxu0
      %2470 = vmatprep.mubr.f32.mxu0 0.0
      %2471 = vmatmul.mubr.f32.gmra.mxu0 %v1855
      %v2472 = vpop.f32.mrf.mxu0
      %v2473 = vadd.f32 0.0, %v2472
      %v2474 = vpop.f32.mrf.mxu0
      %2475 = vmatprep.mubr.f32.mxu0 0.0
      %2476 = vmatmul.mubr.f32.gmra.mxu0 %v1858
      %v2477 = vpop.f32.mrf.mxu0
      %v2478 = vadd.f32 0.0, %v2477
      %v2479 = vpop.f32.mrf.mxu0
      %2480 = vmatprep.mubr.f32.mxu0 0.0
      %2481 = vmatmul.mubr.f32.gmra.mxu0 %v1861
      %v2482 = vpop.f32.mrf.mxu0
      %v2483 = vadd.f32 0.0, %v2482
      %v2484 = vpop.f32.mrf.mxu0
      %2485 = vmatprep.mubr.f32.mxu0 0.0
      %2486 = vmatmul.mubr.f32.gmra.mxu0 %v1864
      %v2487 = vpop.f32.mrf.mxu0
      %v2488 = vadd.f32 0.0, %v2487
      %v2489 = vpop.f32.mrf.mxu0
      %2490 = vmatprep.mubr.f32.mxu0 0.0
      %2491 = vmatmul.mubr.f32.gmra.mxu0 %v1867
      %v2492 = vpop.f32.mrf.mxu0
      %v2493 = vadd.f32 0.0, %v2492
      %v2494 = vpop.f32.mrf.mxu0
      %2495 = vmatprep.mubr.f32.mxu0 0.0
      %2496 = vmatmul.mubr.f32.gmra.mxu0 %v1870
      %v2497 = vpop.f32.mrf.mxu0
      %v2498 = vadd.f32 0.0, %v2497
      %v2499 = vpop.f32.mrf.mxu0
      %2500 = vmatprep.mubr.f32.mxu0 0.0
      %2501 = vmatmul.mubr.f32.gmra.mxu0 %v1873
      %v2502 = vpop.f32.mrf.mxu0
      %v2503 = vadd.f32 0.0, %v2502
      %v2504 = vpop.f32.mrf.mxu0
      %2505 = vmatprep.mubr.f32.mxu0 0.0
      %2506 = vmatmul.mubr.f32.gmra.mxu0 %v1876
      %v2507 = vpop.f32.mrf.mxu0
      %v2508 = vadd.f32 0.0, %v2507
      %v2509 = vpop.f32.mrf.mxu0
      %2510 = vmatprep.mubr.f32.mxu0 0.0
      %2511 = vmatmul.mubr.f32.gmra.mxu0 %v1879
      %v2512 = vpop.f32.mrf.mxu0
      %v2513 = vadd.f32 0.0, %v2512
      %v2514 = vpop.f32.mrf.mxu0
      %2515 = vmatprep.mubr.f32.mxu0 0.0
      %2516 = vmatmul.mubr.f32.gmra.mxu0 %v1882
      %v2517 = vpop.f32.mrf.mxu0
      %v2518 = vadd.f32 0.0, %v2517
      %v2519 = vpop.f32.mrf.mxu0
      %2520 = vmatprep.mubr.f32.mxu0 0.0
      %2521 = vmatmul.mubr.f32.gmra.mxu0 %v1885
      %v2522 = vpop.f32.mrf.mxu0
      %v2523 = vadd.f32 0.0, %v2522
      %v2524 = vpop.f32.mrf.mxu0
      %2525 = vmatprep.mubr.f32.mxu0 0.0
      %2526 = vmatmul.mubr.f32.gmra.mxu0 %v1888
      %v2527 = vpop.f32.mrf.mxu0
      %v2528 = vadd.f32 0.0, %v2527
      %v2529 = vpop.f32.mrf.mxu0
      %2530 = vmatprep.mubr.f32.mxu0 0.0
      %2531 = vmatmul.mubr.f32.gmra.mxu0 %v1891
      %v2532 = vpop.f32.mrf.mxu0
      %v2533 = vadd.f32 0.0, %v2532
      %v2534 = vpop.f32.mrf.mxu0
      %2535 = vmatprep.mubr.f32.mxu0 0.0
      %2536 = vmatmul.mubr.f32.gmra.mxu0 %v1894
      %v2537 = vpop.f32.mrf.mxu0
      %v2538 = vadd.f32 0.0, %v2537
      %v2539 = vpop.f32.mrf.mxu0
      %2540 = vmatprep.mubr.f32.mxu0 0.0
      %2541 = vmatmul.mubr.f32.gmra.mxu0 %v1897
      %v2542 = vpop.f32.mrf.mxu0
      %v2543 = vadd.f32 0.0, %v2542
      %v2544 = vpop.f32.mrf.mxu0
      %2545 = vmatprep.mubr.f32.mxu0 0.0
      %2546 = vmatmul.mubr.f32.gmra.mxu0 %v1900
      %v2547 = vpop.f32.mrf.mxu0
      %v2548 = vadd.f32 0.0, %v2547
      %v2549 = vpop.f32.mrf.mxu0
      %2550 = vmatprep.mubr.f32.mxu0 0.0
      %2551 = vmatmul.mubr.f32.gmra.mxu0 %v1903
      %v2552 = vpop.f32.mrf.mxu0
      %v2553 = vadd.f32 0.0, %v2552
      %v2554 = vpop.f32.mrf.mxu0
      %2555 = vmatprep.mubr.f32.mxu0 0.0
      %2556 = vmatmul.mubr.f32.gmra.mxu0 %v1906
      %v2557 = vpop.f32.mrf.mxu0
      %v2558 = vadd.f32 0.0, %v2557
      %v2559 = vpop.f32.mrf.mxu0
      %2560 = vmatprep.mubr.f32.mxu0 0.0
      %2561 = vmatmul.mubr.f32.gmra.mxu0 %v1909
      %v2562 = vpop.f32.mrf.mxu0
      %v2563 = vadd.f32 0.0, %v2562
      %v2564 = vpop.f32.mrf.mxu0
      %2565 = vmatprep.mubr.f32.mxu0 0.0
      %2566 = vmatmul.mubr.f32.gmra.mxu0 %v1912
      %v2567 = vpop.f32.mrf.mxu0
      %v2568 = vadd.f32 0.0, %v2567
      %v2569 = vpop.f32.mrf.mxu0
      %2570 = vmatprep.mubr.f32.mxu0 0.0
      %2571 = vmatmul.mubr.f32.gmra.mxu0 %v1915
      %v2572 = vpop.f32.mrf.mxu0
      %v2573 = vadd.f32 0.0, %v2572
      %v2574 = vpop.f32.mrf.mxu0
      %2575 = vmatprep.mubr.f32.mxu0 0.0
      %2576 = vmatmul.mubr.f32.gmra.mxu0 %v1918
      %v2577 = vpop.f32.mrf.mxu0
      %v2578 = vadd.f32 0.0, %v2577
      %v2579 = vpop.f32.mrf.mxu0
      %2580 = vmatprep.mubr.f32.mxu0 0.0
      %2581 = vmatmul.mubr.f32.gmra.mxu0 %v1921
      %v2582 = vpop.f32.mrf.mxu0
      %v2583 = vadd.f32 0.0, %v2582
      %v2584 = vpop.f32.mrf.mxu0
      %2585 = vmatprep.mubr.f32.mxu0 0.0
      %2586 = vmatmul.mubr.f32.gmra.mxu0 %v1924
      %v2587 = vpop.f32.mrf.mxu0
      %v2588 = vadd.f32 0.0, %v2587
      %v2589 = vpop.f32.mrf.mxu0
      %2590 = vmatprep.mubr.f32.mxu0 0.0
      %2591 = vmatmul.mubr.f32.gmra.mxu0 %v1927
      %v2592 = vpop.f32.mrf.mxu0
      %v2593 = vadd.f32 0.0, %v2592
      %v2594 = vpop.f32.mrf.mxu0
      %2595 = vmatprep.mubr.f32.mxu0 0.0
      %2596 = vmatmul.mubr.f32.gmra.mxu0 %v2155
      %v2597 = vpop.f32.mrf.mxu0
      %v2598 = vadd.f32 0.0, %v2597
      %v2599 = vpop.f32.mrf.mxu0
      %2600 = vmatprep.mubr.f32.mxu0 0.0
      %2601 = vmatmul.mubr.f32.gmra.mxu0 %v2158
      %v2602 = vpop.f32.mrf.mxu0
      %v2603 = vadd.f32 0.0, %v2602
      %v2604 = vpop.f32.mrf.mxu0
      %2605 = vmatprep.mubr.f32.mxu0 0.0
      %2606 = vmatmul.mubr.f32.gmra.mxu0 %v2386
      %v2607 = vpop.f32.mrf.mxu0
      %v2608 = vadd.f32 0.0, %v2607
      %v2609 = vpop.f32.mrf.mxu0
      %2610 = vmatprep.mubr.f32.mxu0 0.0
      %2611 = vmatmul.mubr.f32.gmra.mxu0 %v2389
      %v2612 = vpop.f32.mrf.mxu0
      %v2613 = vadd.f32 0.0, %v2612
      %v2614 = vpop.f32.mrf.mxu0
      %2615 = vdwg.mxu0
      %v2616 = vadd.f32 %v2227, %v2458
      %v2617 = vadd.f32 %v2232, %v2463
      %v2618 = vadd.f32 %v2237, %v2468
      %v2619 = vadd.f32 %v2242, %v2473
      %v2620 = vadd.f32 %v2247, %v2478
      %v2621 = vadd.f32 %v2252, %v2483
      %v2622 = vadd.f32 %v2257, %v2488
      %v2623 = vadd.f32 %v2262, %v2493
      %v2624 = vadd.f32 %v2267, %v2498
      %v2625 = vadd.f32 %v2272, %v2503
      %v2626 = vadd.f32 %v2277, %v2508
      %v2627 = vadd.f32 %v2282, %v2513
      %v2628 = vadd.f32 %v2287, %v2518
      %v2629 = vadd.f32 %v2292, %v2523
      %v2630 = vadd.f32 %v2297, %v2528
      %v2631 = vadd.f32 %v2302, %v2533
      %v2632 = vadd.f32 %v2307, %v2538
      %v2633 = vadd.f32 %v2312, %v2543
      %v2634 = vadd.f32 %v2317, %v2548
      %v2635 = vadd.f32 %v2322, %v2553
      %v2636 = vadd.f32 %v2327, %v2558
      %v2637 = vadd.f32 %v2332, %v2563
      %v2638 = vadd.f32 %v2337, %v2568
      %v2639 = vadd.f32 %v2342, %v2573
      %v2640 = vadd.f32 %v2347, %v2578
      %v2641 = vadd.f32 %v2352, %v2583
      %v2642 = vadd.f32 %v2357, %v2588
      %v2643 = vadd.f32 %v2362, %v2593
      %v2644 = vadd.f32 %v2367, %v2598
      %v2645 = vadd.f32 %v2372, %v2603
      %v2646 = vadd.f32 %v2377, %v2608
      %v2647 = vadd.f32 %v2382, %v2613
      %v2649 = vlaneseq
      %v2650 = vshrl.u32 %v2649, 7
      %v2651 = vsub.s32 0, %v2650
      %v2652 = vrot.slane %v1796, %v2651
      %v2654 = vadd.f32 %v2616, %v2652
      %v2655 = vadd.f32 %v2617, %v2652
      %v2656 = vadd.f32 %v2618, %v2652
      %v2657 = vadd.f32 %v2619, %v2652
      %v2658 = vadd.f32 %v2620, %v2652
      %v2659 = vadd.f32 %v2621, %v2652
      %v2660 = vadd.f32 %v2622, %v2652
      %v2661 = vadd.f32 %v2623, %v2652
      %v2662 = vadd.f32 %v2624, %v2652
      %v2663 = vadd.f32 %v2625, %v2652
      %v2664 = vadd.f32 %v2626, %v2652
      %v2665 = vadd.f32 %v2627, %v2652
      %v2666 = vadd.f32 %v2628, %v2652
      %v2667 = vadd.f32 %v2629, %v2652
      %v2668 = vadd.f32 %v2630, %v2652
      %v2669 = vadd.f32 %v2631, %v2652
      %v2670 = vadd.f32 %v2632, %v2652
      %v2671 = vadd.f32 %v2633, %v2652
      %v2672 = vadd.f32 %v2634, %v2652
      %v2673 = vadd.f32 %v2635, %v2652
      %v2674 = vadd.f32 %v2636, %v2652
      %v2675 = vadd.f32 %v2637, %v2652
      %v2676 = vadd.f32 %v2638, %v2652
      %v2677 = vadd.f32 %v2639, %v2652
      %v2678 = vadd.f32 %v2640, %v2652
      %v2679 = vadd.f32 %v2641, %v2652
      %v2680 = vadd.f32 %v2642, %v2652
      %v2681 = vadd.f32 %v2643, %v2652
      %v2682 = vadd.f32 %v2644, %v2652
      %v2683 = vadd.f32 %v2645, %v2652
      %v2684 = vadd.f32 %v2646, %v2652
      %v2685 = vadd.f32 %v2647, %v2652
      %v2686 = vmax.f32 %v2654, 0.0
      %v2687 = vmax.f32 %v2655, 0.0
      %v2688 = vmax.f32 %v2656, 0.0
      %v2689 = vmax.f32 %v2657, 0.0
      %v2690 = vmax.f32 %v2658, 0.0
      %v2691 = vmax.f32 %v2659, 0.0
      %v2692 = vmax.f32 %v2660, 0.0
      %v2693 = vmax.f32 %v2661, 0.0
      %v2694 = vmax.f32 %v2662, 0.0
      %v2695 = vmax.f32 %v2663, 0.0
      %v2696 = vmax.f32 %v2664, 0.0
      %v2697 = vmax.f32 %v2665, 0.0
      %v2698 = vmax.f32 %v2666, 0.0
      %v2699 = vmax.f32 %v2667, 0.0
      %v2700 = vmax.f32 %v2668, 0.0
      %v2701 = vmax.f32 %v2669, 0.0
      %v2702 = vmax.f32 %v2670, 0.0
      %v2703 = vmax.f32 %v2671, 0.0
      %v2704 = vmax.f32 %v2672, 0.0
      %v2705 = vmax.f32 %v2673, 0.0
      %v2706 = vmax.f32 %v2674, 0.0
      %v2707 = vmax.f32 %v2675, 0.0
      %v2708 = vmax.f32 %v2676, 0.0
      %v2709 = vmax.f32 %v2677, 0.0
      %v2710 = vmax.f32 %v2678, 0.0
      %v2711 = vmax.f32 %v2679, 0.0
      %v2712 = vmax.f32 %v2680, 0.0
      %v2713 = vmax.f32 %v2681, 0.0
      %v2714 = vmax.f32 %v2682, 0.0
      %v2715 = vmax.f32 %v2683, 0.0
      %v2716 = vmax.f32 %v2684, 0.0
      %v2717 = vmax.f32 %v2685, 0.0
      %2718 = vst.msk [vmem:[%s224] sm:$0xff] %vm1715, %v2686
      %2719 = vst.msk [vmem:[%s224 + $0x8] sm:$0xff] %vm1715, %v2687
      %2720 = vst.msk [vmem:[%s224 + $0x10] sm:$0xff] %vm1715, %v2688
      %2721 = vst.msk [vmem:[%s224 + $0x18] sm:$0xff] %vm1715, %v2689
      %2722 = vst.msk [vmem:[%s224 + $0x20] sm:$0xff] %vm1715, %v2690
      %2723 = vst.msk [vmem:[%s224 + $0x28] sm:$0xff] %vm1715, %v2691
      %2724 = vst.msk [vmem:[%s224 + $0x30] sm:$0xff] %vm1715, %v2692
      %2725 = vst.msk [vmem:[%s224 + $0x38] sm:$0xff] %vm1715, %v2693
      %2726 = vst.msk [vmem:[%s224 + $0x40] sm:$0xff] %vm1715, %v2694
      %2727 = vst.msk [vmem:[%s224 + $0x48] sm:$0xff] %vm1715, %v2695
      %2728 = vst.msk [vmem:[%s224 + $0x50] sm:$0xff] %vm1715, %v2696
      %2729 = vst.msk [vmem:[%s224 + $0x58] sm:$0xff] %vm1715, %v2697
      %2730 = vst.msk [vmem:[%s224 + $0x60] sm:$0xff] %vm1715, %v2698
      %2731 = vst.msk [vmem:[%s224 + $0x68] sm:$0xff] %vm1715, %v2699
      %2732 = vst.msk [vmem:[%s224 + $0x70] sm:$0xff] %vm1715, %v2700
      %2733 = vst.msk [vmem:[%s224 + $0x78] sm:$0xff] %vm1715, %v2701
      %2734 = vst.msk [vmem:[%s224 + $0x80] sm:$0xff] %vm1715, %v2702
      %2735 = vst.msk [vmem:[%s224 + $0x88] sm:$0xff] %vm1715, %v2703
      %2736 = vst.msk [vmem:[%s224 + $0x90] sm:$0xff] %vm1715, %v2704
      %2737 = vst.msk [vmem:[%s224 + $0x98] sm:$0xff] %vm1715, %v2705
      %2738 = vst.msk [vmem:[%s224 + $0xa0] sm:$0xff] %vm1715, %v2706
      %2739 = vst.msk [vmem:[%s224 + $0xa8] sm:$0xff] %vm1715, %v2707
      %2740 = vst.msk [vmem:[%s224 + $0xb0] sm:$0xff] %vm1715, %v2708
      %2741 = vst.msk [vmem:[%s224 + $0xb8] sm:$0xff] %vm1715, %v2709
      %2742 = vst.msk [vmem:[%s224 + $0xc0] sm:$0xff] %vm1715, %v2710
      %2743 = vst.msk [vmem:[%s224 + $0xc8] sm:$0xff] %vm1715, %v2711
      %2744 = vst.msk [vmem:[%s224 + $0xd0] sm:$0xff] %vm1715, %v2712
      %2745 = vst.msk [vmem:[%s224 + $0xd8] sm:$0xff] %vm1715, %v2713
      %2746 = vst.msk [vmem:[%s224 + $0xe0] sm:$0xff] %vm1715, %v2714
      %2747 = vst.msk [vmem:[%s224 + $0xe8] sm:$0xff] %vm1715, %v2715
      %2748 = vst.msk [vmem:[%s224 + $0xf0] sm:$0xff] %vm1715, %v2716
      %2749 = vst.msk [vmem:[%s224 + $0xf8] sm:$0xff] %vm1715, %v2717
      %p2750 = scmp.lt.s32.totalorder %s16, 1
      %s2751 = scalar_select %p2750, %s16, 1
      %s2752 = smul.addr %s2751, 32
      %s2753 = smul.addr %s2752, 8
      %s2754 = scalar_lea.vmem %s5, %s2753
      // Predicated region
      $region41: #{_fire_forward.1} parent=39 // pred_check
        %p2755 = pneg %p144
      $region42: #{_fire_forward.1} parent=39 // pred_check_branch
        %2757 = sbr.rel (%p2755) target = $region44
      $region43: #{_fire_forward.1} parent=39 // pred_region
        _
      $region44: #{_fire_forward.1} parent=39 // pred_fallthru
        _
    $region40: #{_fire_forward.1} parent=5 // pred_fallthru
      _
    %p2758 = scmp.le.s32.totalorder 2, %s11
    // Predicated region
    $region45: #{_fire_forward.1} parent=5 // pred_check
      %p2759 = pneg %p2758
    $region46: #{_fire_forward.1} parent=5 // pred_check_branch
      %2761 = sbr.rel (%p2759) target = $region48
    $region47: #{_fire_forward.1} parent=5 // pred_region
      %s2762 = ssub.s32 %s11, 2
      // Predicated region
      $region49: #{_fire_forward.1} parent=47 // pred_check
        %p2763 = pneg %p150
      $region50: #{_fire_forward.1} parent=47 // pred_check_branch
        %2765 = sbr.rel (%p2763) target = $region52
      $region51: #{_fire_forward.1} parent=47 // pred_region
        %p2766 = scmp.lt.s32.totalorder %s17, 1
        %s2767 = scalar_select %p2766, %s17, 1
        %s2768 = smul.addr %s2767, 32
        %s2769 = smul.addr %s2768, 8
        %s2770 = scalar_lea.vmem %s5, %s2769
      $region52: #{_fire_forward.1} parent=47 // pred_fallthru
        _
    $region48: #{_fire_forward.1} parent=5 // pred_fallthru
      _
  $region6: #{_fire_forward.1} parent=0 // loop_footer
    %s15 = sadd.s32 1, %s11
  $region7: #{_fire_forward.1} parent=0 // loop_footer_branch
    %10 = sbr.rel target = $region3
  $region8: #{_fire_forward.1} parent=0 // loop_exit
    _

</llo_original>
